<compile_context>
chip_gen: v6e
topology: v6e:2x2x1
jax: 0.10.0
libtpu: 0.0.40
codegen_flags: <defaults>
</compile_context>

<pallas_src>
import functools

import jax
import jax.numpy as jnp
from jax.experimental import pallas as pl
from jax.experimental.pallas import tpu as pltpu

EPS = 1e-5  # PyG BatchNorm default eps


# ----------------------------- Pallas kernel ------------------------------ #
def _gcns_kernel(xt_ref, a_ref,
                 w1t_ref, g1_ref, b1_ref,
                 w2t_ref, g2_ref, b2_ref,
                 w3t_ref, bias3_ref,
                 out_ref,
                 p_ref, acc_ref,
                 *, inv_n):
    """Grid = (layer l in {0,1,2}, contraction tile k over rows of A_hat).

    Feature-major layout:
      xt_ref   : (C_in, N) bf16     node features, transposed (resident)
      a_ref    : (tk,  N)  bf16     row panel k of symmetric A_hat
                                    (tk == N -> resident, fetched once)
      w1t_ref  : (16, C_in) bf16    transposed GCN weight, layer 1
      w2t/w3t  : (16, 16)  f32      transposed GCN weights (w3 zero-padded)
      g*/b*    : (16, 1)   f32      BatchNorm affine params
      out_ref  : (out_c, N) f32     lane-dense output (sigmoid)
      p_ref    : (16, N) bf16 scratch  P_l^T = W_l^T @ H_{l-1}^T (persistent)
      acc_ref  : (16, N) f32  scratch  accumulator for Z_l^T = P_l^T @ A_hat
      inv_n    : 1 / true_N (static) -- BN uses the real node count even when
                                        N is zero-padded to a 128 multiple.
    """
    l = pl.program_id(0)
    k = pl.program_id(1)
    nk = pl.num_programs(1)
    tk = a_ref.shape[0]
    out_c = out_ref.shape[0]

    # ---- layer start: reset accumulator; build P1 = W1^T @ X^T once ----
    @pl.when(k == 0)
    def _zero_acc():
        acc_ref[...] = jnp.zeros_like(acc_ref)

    @pl.when(jnp.logical_and(l == 0, k == 0))
    def _init_p():
        p_ref[...] = jnp.dot(w1t_ref[...], xt_ref[...],
                             preferred_element_type=jnp.float32
                             ).astype(jnp.bfloat16)

    # ---- accumulate Z_l^T += P_l^T[:, k-tile] @ A_hat[k-tile, :] (bf16 MXU,
    # f32 accumulation) ----
    start = pl.multiple_of(k * tk, tk)
    acc_ref[...] += jnp.dot(p_ref[:, pl.ds(start, tk)], a_ref[...],
                            preferred_element_type=jnp.float32)

    # One-pass BatchNorm (batch stats, biased var) + ReLU, feature-major.
    def _bn_relu(z, g_ref, b_ref):
        mean = jnp.sum(z, axis=-1, keepdims=True) * inv_n          # (16, 1)
        ex2 = jnp.sum(z * z, axis=-1, keepdims=True) * inv_n
        var = ex2 - mean * mean
        scale = g_ref[...] * jax.lax.rsqrt(var + EPS)              # EUP rsqrt
        shift = b_ref[...] - mean * scale
        return jnp.maximum(z * scale + shift, 0.0)

    # ---- layer end: BN+ReLU and stage next layer's P, or final sigmoid ----
    @pl.when(k == nk - 1)
    def _finalize():
        @pl.when(l == 0)
        def _():
            h = _bn_relu(acc_ref[...], g1_ref, b1_ref)              # (16, N) f32
            p_ref[...] = jnp.dot(w2t_ref[...], h,
                                 preferred_element_type=jnp.float32
                                 ).astype(jnp.bfloat16)

        @pl.when(l == 1)
        def _():
            h = _bn_relu(acc_ref[...], g2_ref, b2_ref)              # (16, N) f32
            p_ref[...] = jnp.dot(w3t_ref[...], h,                   # rows >= out_c are 0
                                 preferred_element_type=jnp.float32
                                 ).astype(jnp.bfloat16)

        @pl.when(l == 2)
        def _():
            z = acc_ref[0:out_c, :] + bias3_ref[...]                # (out_c, N)
            # sigmoid via EUP exp + approximate reciprocal (idle slot)
            out_ref[...] = pl.reciprocal(1.0 + jnp.exp(-z), approx=True)


# --------------------------- VMEM-aware tiling ----------------------------- #
def _vmem_budget_bytes():
    """~75% of physical VMEM (v5e/v6e: 128 MiB, v7x: 64 MiB)."""
    phys = 64 * 1024 * 1024  # conservative fallback (v7x)
    try:
        info = pltpu.get_tpu_info()
        phys = int(getattr(info, "vmem_capacity_bytes", phys))
    except Exception:
        pass
    return (phys * 3) // 4


def _vmem_usage_bytes(n_pad, tk, c_in, hidden, out_c):
    a_buf = 2 * tk * n_pad * 2          # bf16 A panel, double-buffered
    xt_buf = 2 * c_in * n_pad * 2       # bf16 X^T (constant index, 2 buffers)
    p_buf = hidden * n_pad * 2          # bf16 P^T scratch
    acc_buf = hidden * n_pad * 4        # f32 accumulator scratch
    out_buf = 2 * out_c * n_pad * 4     # f32 output, double-buffered
    small = 256 * 1024                  # weights, BN params, slack
    return a_buf + xt_buf + p_buf + acc_buf + out_buf + small


def _pick_tk(n_pad, budget, c_in, hidden, out_c):
    """Prefer a fully VMEM-resident A (fetched once for all 3 layers); else the
    largest lane-aligned streaming row panel that fits the budget."""
    candidates = [n_pad] + [t for t in (4096, 2048, 1024, 512, 256, 128)
                            if t < n_pad]
    for tk in candidates:
        if n_pad % tk == 0 and _vmem_usage_bytes(
                n_pad, tk, c_in, hidden, out_c) <= budget:
            return tk
    return 128  # last resort for huge N


# ------------------------------- wrapper ---------------------------------- #
def gcns_forward(a_hat, x, params):
    """Fused GCNS forward.  x: (N, C_in) node-major; a_hat: (N, N) symmetric."""
    n, c_in = x.shape
    hidden = params["w1"].shape[1]
    out_c = params["w3"].shape[1]
    assert out_c <= hidden

    # Pad N to a lane-dense multiple of 128 (padded rows/cols of A are zero,
    # so they stay inert; BN divides by the true N).
    n_pad = ((n + 127) // 128) * 128
    x_f = jnp.asarray(x, jnp.float32)
    a_f = jnp.asarray(a_hat, jnp.float32)
    if n_pad != n:
        x_f = jnp.pad(x_f, ((0, n_pad - n), (0, 0)))
        a_f = jnp.pad(a_f, ((0, n_pad - n), (0, n_pad - n)))

    budget = _vmem_budget_bytes()
    tk = _pick_tk(n_pad, budget, c_in, hidden, out_c)
    nk = n_pad // tk

    # Layout plumbing to feature-major + bf16 for the HBM-dominant operands.
    xt = x_f.T.astype(jnp.bfloat16)                                  # (C_in, N)
    a_bf = a_f.astype(jnp.bfloat16)                                  # (N, N)
    w1t = params["w1"].T.astype(jnp.bfloat16)                        # (16, C_in)
    w2t = params["w2"].T.astype(jnp.float32)                         # (16, 16)
    w3t = jnp.zeros((hidden, hidden), jnp.float32).at[:out_c, :].set(
        params["w3"].T.astype(jnp.float32))                          # zero-padded
    g1 = params["g1"].reshape(hidden, 1).astype(jnp.float32)
    b1 = params["b1"].reshape(hidden, 1).astype(jnp.float32)
    g2 = params["g2"].reshape(hidden, 1).astype(jnp.float32)
    b2 = params["b2"].reshape(hidden, 1).astype(jnp.float32)
    bias3 = params["bias3"].reshape(out_c, 1).astype(jnp.float32)

    kernel = functools.partial(_gcns_kernel, inv_n=1.0 / n)

    vmem_limit = max(_vmem_usage_bytes(n_pad, tk, c_in, hidden, out_c),
                     32 * 1024 * 1024)
    vmem_limit = min(vmem_limit + 8 * 1024 * 1024, budget)

    out_t = pl.pallas_call(
        kernel,
        out_shape=jax.ShapeDtypeStruct((out_c, n_pad), jnp.float32),
        grid_spec=pltpu.PrefetchScalarGridSpec(
            num_scalar_prefetch=0,
            grid=(3, nk),                                            # (layer, k-tile)
            in_specs=[
                pl.BlockSpec((c_in, n_pad), lambda l, k: (0, 0)),    # X^T (resident)
                # A_hat row panel; when tk == n_pad the block index is constant
                # -> fetched once and reused across all three layers.
                pl.BlockSpec((tk, n_pad), lambda l, k: (k, 0)),
                pl.BlockSpec((hidden, c_in), lambda l, k: (0, 0)),   # W1^T
                pl.BlockSpec((hidden, 1), lambda l, k: (0, 0)),      # g1
                pl.BlockSpec((hidden, 1), lambda l, k: (0, 0)),      # b1
                pl.BlockSpec((hidden, hidden), lambda l, k: (0, 0)), # W2^T
                pl.BlockSpec((hidden, 1), lambda l, k: (0, 0)),      # g2
                pl.BlockSpec((hidden, 1), lambda l, k: (0, 0)),      # b2
                pl.BlockSpec((hidden, hidden), lambda l, k: (0, 0)), # W3^T (padded)
                pl.BlockSpec((out_c, 1), lambda l, k: (0, 0)),       # bias3
            ],
            out_specs=pl.BlockSpec((out_c, n_pad), lambda l, k: (0, 0)),
            scratch_shapes=[
                pltpu.VMEM((hidden, n_pad), jnp.bfloat16),           # P_l^T
                pltpu.VMEM((hidden, n_pad), jnp.float32),            # Z_l^T acc
            ],
        ),
        compiler_params=pltpu.CompilerParams(
            # layers are sequential; k is a reduction -> both arbitrary
            dimension_semantics=("arbitrary", "arbitrary"),
            vmem_limit_bytes=int(vmem_limit)),
    )(xt, a_bf, w1t, g1, b1, w2t, g2, b2, w3t, bias3)

    return out_t[:, :n].T                                            # (N, out_c)


# ------------------------------ graph glue -------------------------------- #
def gcn_normalized_adjacency(edge_index, num_nodes):
    """Dense A_hat = D^{-1/2} (A + I) D^{-1/2}, matching PyG GCNConv defaults."""
    src, dst = edge_index
    loop = jnp.arange(num_nodes, dtype=src.dtype)
    src = jnp.concatenate([src, loop])
    dst = jnp.concatenate([dst, loop])
    adj = jnp.zeros((num_nodes, num_nodes), jnp.float32).at[dst, src].add(1.0)
    deg = adj.sum(axis=1)
    dinv = jnp.where(deg > 0, 1.0 / jnp.sqrt(deg), 0.0)
    return dinv[:, None] * adj * dinv[None, :]


def init_params(key, in_channels=8, hidden=16, out_channels=1):
    k1, k2, k3 = jax.random.split(key, 3)

    def glorot(k, fan_in, fan_out):
        s = jnp.sqrt(6.0 / (fan_in + fan_out))
        return jax.random.uniform(k, (fan_in, fan_out), jnp.float32, -s, s)

    return {
        "w1": glorot(k1, in_channels, hidden),
        "g1": jnp.ones((hidden,), jnp.float32),
        "b1": jnp.zeros((hidden,), jnp.float32),
        "w2": glorot(k2, hidden, hidden),
        "g2": jnp.ones((hidden,), jnp.float32),
        "b2": jnp.zeros((hidden,), jnp.float32),
        "w3": glorot(k3, hidden, out_channels),
        "bias3": jnp.zeros((out_channels,), jnp.float32),
    }


# --------------------------- pure-JAX reference ---------------------------- #
def gcns_reference(a_hat, x, params):
    def bn(h, g, b):
        mean = jnp.mean(h, axis=0, keepdims=True)
        var = jnp.mean((h - mean) ** 2, axis=0, keepdims=True)
        return g[None, :] * (h - mean) / jnp.sqrt(var + EPS) + b[None, :]

    dot = lambda a, b: jnp.dot(a, b, precision="highest")
    h = dot(a_hat, dot(x, params["w1"]))
    h = jnp.maximum(bn(h, params["g1"], params["b1"]), 0.0)
    h = dot(a_hat, dot(h, params["w2"]))
    h = jnp.maximum(bn(h, params["g2"], params["b2"]), 0.0)
    h = dot(a_hat, dot(h, params["w3"])) + params["bias3"][None, :]
    return jax.nn.sigmoid(h)


if __name__ == "__main__":
    key = jax.random.PRNGKey(0)
    k_x, k_p = jax.random.split(key)

    num_nodes = 256
    in_channels = 8

    # deterministic node features
    x = jax.random.normal(k_x, (num_nodes, in_channels), jnp.float32)

    # deterministic ring + 2-hop graph (bidirectional), edge_index (2, E)
    idx = jnp.arange(num_nodes, dtype=jnp.int32)
    nxt = (idx + 1) % num_nodes
    hop2 = (idx + 2) % num_nodes
    edge_index = jnp.stack([
        jnp.concatenate([idx, nxt, idx, hop2]),
        jnp.concatenate([nxt, idx, hop2, idx]),
    ], axis=0)

    a_hat = gcn_normalized_adjacency(edge_index, num_nodes)
    params = init_params(k_p, in_channels=in_channels, hidden=16, out_channels=1)

    out = gcns_forward(a_hat, x, params)
    out = jax.block_until_ready(out)

    assert out.shape == (num_nodes, 1)
    assert bool(jnp.all(jnp.isfinite(out)))
    assert bool(jnp.all((out >= 0.0) & (out <= 1.0)))

    # Reference with the same bf16 rounding of the large operands (kernel keeps
    # f32 accumulation everywhere), so the comparison isolates kernel logic.
    x_r = x.astype(jnp.bfloat16).astype(jnp.float32)
    a_r = a_hat.astype(jnp.bfloat16).astype(jnp.float32)
    params_r = dict(params)
    params_r["w1"] = params["w1"].astype(jnp.bfloat16).astype(jnp.float32)
    ref = gcns_reference(a_r, x_r, params_r)
    assert bool(jnp.allclose(out, ref, rtol=2e-2, atol=2e-2)), \
        "mismatch vs JAX reference"

    # Looser sanity check against the pure-f32 reference.
    ref_f32 = gcns_reference(a_hat, x, params)
    assert bool(jnp.allclose(out, ref_f32, rtol=5e-2, atol=5e-2))

    print("KERNEL_OK")
</pallas_src>

<mosaic_0001>
module attributes {stable_mosaic.version = 11 : i64} {
  func.func @_gcns_kernel(%arg0: i32, %arg1: i32, %arg2: memref<8x256xbf16, #tpu.memory_space<vmem>>, %arg3: memref<256x256xbf16, #tpu.memory_space<vmem>>, %arg4: memref<16x8xbf16, #tpu.memory_space<vmem>>, %arg5: memref<16x1xf32, #tpu.memory_space<vmem>>, %arg6: memref<16x1xf32, #tpu.memory_space<vmem>>, %arg7: memref<16x16xf32, #tpu.memory_space<vmem>>, %arg8: memref<16x1xf32, #tpu.memory_space<vmem>>, %arg9: memref<16x1xf32, #tpu.memory_space<vmem>>, %arg10: memref<16x16xf32, #tpu.memory_space<vmem>>, %arg11: memref<1x1xf32, #tpu.memory_space<vmem>>, %arg12: memref<1x256xf32, #tpu.memory_space<vmem>>, %arg13: memref<16x256xbf16, #tpu.memory_space<vmem>>, %arg14: memref<16x256xf32, #tpu.memory_space<vmem>>) attributes {dimension_semantics = [#tpu.dimension_semantics<arbitrary>, #tpu.dimension_semantics<arbitrary>], iteration_bounds = array<i64: 3, 1>, scalar_prefetch = 0 : i64, scratch_operands = 2 : i64, tpu.core_type = #tpu.core_type<tc>, window_params = [{pipeline_mode = #tpu.pipeline_mode<synchronous>, transform_indices = @transform_0, window_bounds = array<i64: 8, 256>}, {transform_indices = @transform_1, window_bounds = array<i64: 256, 256>}, {pipeline_mode = #tpu.pipeline_mode<synchronous>, transform_indices = @transform_2, window_bounds = array<i64: 16, 8>}, {pipeline_mode = #tpu.pipeline_mode<synchronous>, transform_indices = @transform_3, window_bounds = array<i64: 16, 1>}, {pipeline_mode = #tpu.pipeline_mode<synchronous>, transform_indices = @transform_4, window_bounds = array<i64: 16, 1>}, {pipeline_mode = #tpu.pipeline_mode<synchronous>, transform_indices = @transform_5, window_bounds = array<i64: 16, 16>}, {pipeline_mode = #tpu.pipeline_mode<synchronous>, transform_indices = @transform_6, window_bounds = array<i64: 16, 1>}, {pipeline_mode = #tpu.pipeline_mode<synchronous>, transform_indices = @transform_7, window_bounds = array<i64: 16, 1>}, {pipeline_mode = #tpu.pipeline_mode<synchronous>, transform_indices = @transform_8, window_bounds = array<i64: 16, 16>}, {pipeline_mode = #tpu.pipeline_mode<synchronous>, transform_indices = @transform_9, window_bounds = array<i64: 1, 1>}, {pipeline_mode = #tpu.pipeline_mode<synchronous>, transform_indices = @transform_10, window_bounds = array<i64: 1, 256>}]} {
    %c0_i32 = arith.constant 0 : i32
    %0 = arith.cmpi eq, %arg1, %c0_i32 : i32
    %1 = arith.extui %0 : i1 to i32
    %c0_i32_0 = arith.constant 0 : i32
    %2 = arith.cmpi ne, %1, %c0_i32_0 : i32
    scf.if %2 {
      %cst_12 = arith.constant 0.000000e+00 : f32
      %20 = vector.broadcast %cst_12 : f32 to vector<16x256xf32>
      %c0_13 = arith.constant 0 : index
      %c0_14 = arith.constant 0 : index
      %21 = vector.load %arg14[%c0_13, %c0_14] : memref<16x256xf32, #tpu.memory_space<vmem>>, vector<16x256xf32>
      tpu.vector_store %arg14[%c0_13, %c0_14], %20 {strides = array<i32>} : memref<16x256xf32, #tpu.memory_space<vmem>>, vector<16x256xf32>,
    } else {
    }
    %c0_i32_1 = arith.constant 0 : i32
    %3 = arith.cmpi eq, %arg0, %c0_i32_1 : i32
    %c0_i32_2 = arith.constant 0 : i32
    %4 = arith.cmpi eq, %arg1, %c0_i32_2 : i32
    %5 = arith.andi %3, %4 : i1
    %6 = arith.extui %5 : i1 to i32
    %c0_i32_3 = arith.constant 0 : i32
    %7 = arith.cmpi ne, %6, %c0_i32_3 : i32
    scf.if %7 {
      %c0_12 = arith.constant 0 : index
      %c0_13 = arith.constant 0 : index
      %20 = vector.load %arg4[%c0_12, %c0_13] : memref<16x8xbf16, #tpu.memory_space<vmem>>, vector<16x8xbf16>
      %c0_14 = arith.constant 0 : index
      %c0_15 = arith.constant 0 : index
      %21 = vector.load %arg2[%c0_14, %c0_15] : memref<8x256xbf16, #tpu.memory_space<vmem>>, vector<8x256xbf16>
      %cst_16 = arith.constant dense<0.000000e+00> : vector<16x256xf32>
      %22 = tpu.matmul %20, %21, %cst_16 {dimension_numbers = #tpu.dot_dimension_numbers<[1], [0], [0], [1], [0, 0, 1, 1], [], []>} : vector<16x8xbf16>, vector<8x256xbf16>, vector<16x256xf32> -> vector<16x256xf32>
      %23 = arith.truncf %22 : vector<16x256xf32> to vector<16x256xbf16>
      %c0_17 = arith.constant 0 : index
      %c0_18 = arith.constant 0 : index
      %24 = vector.load %arg13[%c0_17, %c0_18] : memref<16x256xbf16, #tpu.memory_space<vmem>>, vector<16x256xbf16>
      tpu.vector_store %arg13[%c0_17, %c0_18], %23 {strides = array<i32>} : memref<16x256xbf16, #tpu.memory_space<vmem>>, vector<16x256xbf16>,
    } else {
    }
    %c256_i32 = arith.constant 256 : i32
    %8 = arith.muli %arg1, %c256_i32 : i32
    %9 = tpu.assume_multiple %8, 256 : i32
    %c0 = arith.constant 0 : index
    %c0_4 = arith.constant 0 : index
    %10 = vector.load %arg14[%c0, %c0_4] : memref<16x256xf32, #tpu.memory_space<vmem>>, vector<16x256xf32>
    %c0_5 = arith.constant 0 : index
    %11 = arith.index_cast %9 : i32 to index
    %12 = vector.load %arg13[%c0_5, %11] : memref<16x256xbf16, #tpu.memory_space<vmem>>, vector<16x256xbf16>
    %c0_6 = arith.constant 0 : index
    %c0_7 = arith.constant 0 : index
    %13 = vector.load %arg3[%c0_6, %c0_7] : memref<256x256xbf16, #tpu.memory_space<vmem>>, vector<256x256xbf16>
    %cst = arith.constant dense<0.000000e+00> : vector<16x256xf32>
    %14 = tpu.matmul %12, %13, %cst {dimension_numbers = #tpu.dot_dimension_numbers<[1], [0], [0], [1], [0, 0, 1, 1], [], []>} : vector<16x256xbf16>, vector<256x256xbf16>, vector<16x256xf32> -> vector<16x256xf32>
    %15 = arith.addf %10, %14 : vector<16x256xf32>
    %c0_8 = arith.constant 0 : index
    %c0_9 = arith.constant 0 : index
    %16 = vector.load %arg14[%c0_8, %c0_9] : memref<16x256xf32, #tpu.memory_space<vmem>>, vector<16x256xf32>
    tpu.vector_store %arg14[%c0_8, %c0_9], %15 {strides = array<i32>} : memref<16x256xf32, #tpu.memory_space<vmem>>, vector<16x256xf32>,
    %c0_i32_10 = arith.constant 0 : i32
    %17 = arith.cmpi eq, %arg1, %c0_i32_10 : i32
    %18 = arith.extui %17 : i1 to i32
    %c0_i32_11 = arith.constant 0 : i32
    %19 = arith.cmpi ne, %18, %c0_i32_11 : i32
    scf.if %19 {
      %c0_i32_12 = arith.constant 0 : i32
      %20 = arith.cmpi eq, %arg0, %c0_i32_12 : i32
      %21 = arith.extui %20 : i1 to i32
      %c0_i32_13 = arith.constant 0 : i32
      %22 = arith.cmpi ne, %21, %c0_i32_13 : i32
      scf.if %22 {
        %c0_16 = arith.constant 0 : index
        %c0_17 = arith.constant 0 : index
        %29 = vector.load %arg14[%c0_16, %c0_17] : memref<16x256xf32, #tpu.memory_space<vmem>>, vector<16x256xf32>
        %cst_18 = arith.constant dense<0.000000e+00> : vector<16xf32>
        %30 = vector.multi_reduction <add>, %29, %cst_18 [1] : vector<16x256xf32> to vector<16xf32>
        %31 = vector.shape_cast %30 : vector<16xf32> to vector<16x1xf32>
        %cst_19 = arith.constant 3.906250e-03 : f32
        %32 = vector.broadcast %cst_19 : f32 to vector<16x1xf32>
        %33 = arith.mulf %31, %32 : vector<16x1xf32>
        %34 = arith.mulf %29, %29 : vector<16x256xf32>
        %cst_20 = arith.constant dense<0.000000e+00> : vector<16xf32>
        %35 = vector.multi_reduction <add>, %34, %cst_20 [1] : vector<16x256xf32> to vector<16xf32>
        %36 = vector.shape_cast %35 : vector<16xf32> to vector<16x1xf32>
        %cst_21 = arith.constant 3.906250e-03 : f32
        %37 = vector.broadcast %cst_21 : f32 to vector<16x1xf32>
        %38 = arith.mulf %36, %37 : vector<16x1xf32>
        %39 = arith.mulf %33, %33 : vector<16x1xf32>
        %40 = arith.subf %38, %39 : vector<16x1xf32>
        %c0_22 = arith.constant 0 : index
        %c0_23 = arith.constant 0 : index
        %41 = vector.load %arg5[%c0_22, %c0_23] : memref<16x1xf32, #tpu.memory_space<vmem>>, vector<16x1xf32>
        %cst_24 = arith.constant 9.99999974E-6 : f32
        %42 = vector.broadcast %cst_24 : f32 to vector<16x1xf32>
        %43 = arith.addf %40, %42 : vector<16x1xf32>
        %44 = math.rsqrt %43 : vector<16x1xf32>
        %45 = arith.mulf %41, %44 : vector<16x1xf32>
        %c0_25 = arith.constant 0 : index
        %c0_26 = arith.constant 0 : index
        %46 = vector.load %arg6[%c0_25, %c0_26] : memref<16x1xf32, #tpu.memory_space<vmem>>, vector<16x1xf32>
        %47 = arith.mulf %33, %45 : vector<16x1xf32>
        %48 = arith.subf %46, %47 : vector<16x1xf32>
        %49 = vector.broadcast %45 : vector<16x1xf32> to vector<16x256xf32>
        %50 = arith.mulf %29, %49 : vector<16x256xf32>
        %51 = vector.broadcast %48 : vector<16x1xf32> to vector<16x256xf32>
        %52 = arith.addf %50, %51 : vector<16x256xf32>
        %cst_27 = arith.constant 0.000000e+00 : f32
        %53 = vector.broadcast %cst_27 : f32 to vector<16x256xf32>
        %54 = arith.maximumf %52, %53 : vector<16x256xf32>
        %c0_28 = arith.constant 0 : index
        %c0_29 = arith.constant 0 : index
        %55 = vector.load %arg7[%c0_28, %c0_29] : memref<16x16xf32, #tpu.memory_space<vmem>>, vector<16x16xf32>
        %cst_30 = arith.constant dense<0.000000e+00> : vector<16x256xf32>
        %56 = tpu.matmul %55, %54, %cst_30 {dimension_numbers = #tpu.dot_dimension_numbers<[1], [0], [0], [1], [0, 0, 1, 1], [], []>} : vector<16x16xf32>, vector<16x256xf32>, vector<16x256xf32> -> vector<16x256xf32>
        %57 = arith.truncf %56 : vector<16x256xf32> to vector<16x256xbf16>
        %c0_31 = arith.constant 0 : index
        %c0_32 = arith.constant 0 : index
        %58 = vector.load %arg13[%c0_31, %c0_32] : memref<16x256xbf16, #tpu.memory_space<vmem>>, vector<16x256xbf16>
        tpu.vector_store %arg13[%c0_31, %c0_32], %57 {strides = array<i32>} : memref<16x256xbf16, #tpu.memory_space<vmem>>, vector<16x256xbf16>,
      } else {
      }
      %c1_i32 = arith.constant 1 : i32
      %23 = arith.cmpi eq, %arg0, %c1_i32 : i32
      %24 = arith.extui %23 : i1 to i32
      %c0_i32_14 = arith.constant 0 : i32
      %25 = arith.cmpi ne, %24, %c0_i32_14 : i32
      scf.if %25 {
        %c0_16 = arith.constant 0 : index
        %c0_17 = arith.constant 0 : index
        %29 = vector.load %arg14[%c0_16, %c0_17] : memref<16x256xf32, #tpu.memory_space<vmem>>, vector<16x256xf32>
        %cst_18 = arith.constant dense<0.000000e+00> : vector<16xf32>
        %30 = vector.multi_reduction <add>, %29, %cst_18 [1] : vector<16x256xf32> to vector<16xf32>
        %31 = vector.shape_cast %30 : vector<16xf32> to vector<16x1xf32>
        %cst_19 = arith.constant 3.906250e-03 : f32
        %32 = vector.broadcast %cst_19 : f32 to vector<16x1xf32>
        %33 = arith.mulf %31, %32 : vector<16x1xf32>
        %34 = arith.mulf %29, %29 : vector<16x256xf32>
        %cst_20 = arith.constant dense<0.000000e+00> : vector<16xf32>
        %35 = vector.multi_reduction <add>, %34, %cst_20 [1] : vector<16x256xf32> to vector<16xf32>
        %36 = vector.shape_cast %35 : vector<16xf32> to vector<16x1xf32>
        %cst_21 = arith.constant 3.906250e-03 : f32
        %37 = vector.broadcast %cst_21 : f32 to vector<16x1xf32>
        %38 = arith.mulf %36, %37 : vector<16x1xf32>
        %39 = arith.mulf %33, %33 : vector<16x1xf32>
        %40 = arith.subf %38, %39 : vector<16x1xf32>
        %c0_22 = arith.constant 0 : index
        %c0_23 = arith.constant 0 : index
        %41 = vector.load %arg8[%c0_22, %c0_23] : memref<16x1xf32, #tpu.memory_space<vmem>>, vector<16x1xf32>
        %cst_24 = arith.constant 9.99999974E-6 : f32
        %42 = vector.broadcast %cst_24 : f32 to vector<16x1xf32>
        %43 = arith.addf %40, %42 : vector<16x1xf32>
        %44 = math.rsqrt %43 : vector<16x1xf32>
        %45 = arith.mulf %41, %44 : vector<16x1xf32>
        %c0_25 = arith.constant 0 : index
        %c0_26 = arith.constant 0 : index
        %46 = vector.load %arg9[%c0_25, %c0_26] : memref<16x1xf32, #tpu.memory_space<vmem>>, vector<16x1xf32>
        %47 = arith.mulf %33, %45 : vector<16x1xf32>
        %48 = arith.subf %46, %47 : vector<16x1xf32>
        %49 = vector.broadcast %45 : vector<16x1xf32> to vector<16x256xf32>
        %50 = arith.mulf %29, %49 : vector<16x256xf32>
        %51 = vector.broadcast %48 : vector<16x1xf32> to vector<16x256xf32>
        %52 = arith.addf %50, %51 : vector<16x256xf32>
        %cst_27 = arith.constant 0.000000e+00 : f32
        %53 = vector.broadcast %cst_27 : f32 to vector<16x256xf32>
        %54 = arith.maximumf %52, %53 : vector<16x256xf32>
        %c0_28 = arith.constant 0 : index
        %c0_29 = arith.constant 0 : index
        %55 = vector.load %arg10[%c0_28, %c0_29] : memref<16x16xf32, #tpu.memory_space<vmem>>, vector<16x16xf32>
        %cst_30 = arith.constant dense<0.000000e+00> : vector<16x256xf32>
        %56 = tpu.matmul %55, %54, %cst_30 {dimension_numbers = #tpu.dot_dimension_numbers<[1], [0], [0], [1], [0, 0, 1, 1], [], []>} : vector<16x16xf32>, vector<16x256xf32>, vector<16x256xf32> -> vector<16x256xf32>
        %57 = arith.truncf %56 : vector<16x256xf32> to vector<16x256xbf16>
        %c0_31 = arith.constant 0 : index
        %c0_32 = arith.constant 0 : index
        %58 = vector.load %arg13[%c0_31, %c0_32] : memref<16x256xbf16, #tpu.memory_space<vmem>>, vector<16x256xbf16>
        tpu.vector_store %arg13[%c0_31, %c0_32], %57 {strides = array<i32>} : memref<16x256xbf16, #tpu.memory_space<vmem>>, vector<16x256xbf16>,
      } else {
      }
      %c2_i32 = arith.constant 2 : i32
      %26 = arith.cmpi eq, %arg0, %c2_i32 : i32
      %27 = arith.extui %26 : i1 to i32
      %c0_i32_15 = arith.constant 0 : i32
      %28 = arith.cmpi ne, %27, %c0_i32_15 : i32
      scf.if %28 {
        %c0_16 = arith.constant 0 : index
        %c0_17 = arith.constant 0 : index
        %29 = vector.load %arg14[%c0_16, %c0_17] : memref<16x256xf32, #tpu.memory_space<vmem>>, vector<1x256xf32>
        %c0_18 = arith.constant 0 : index
        %c0_19 = arith.constant 0 : index
        %30 = vector.load %arg11[%c0_18, %c0_19] : memref<1x1xf32, #tpu.memory_space<vmem>>, vector<1x1xf32>
        %31 = vector.broadcast %30 : vector<1x1xf32> to vector<1x256xf32>
        %32 = arith.addf %29, %31 : vector<1x256xf32>
        %cst_20 = arith.constant 0.000000e+00 : f32
        %33 = vector.broadcast %cst_20 : f32 to vector<1x256xf32>
        %34 = arith.subf %33, %32 : vector<1x256xf32>
        %35 = math.exp %34 : vector<1x256xf32>
        %cst_21 = arith.constant 1.000000e+00 : f32
        %36 = vector.broadcast %cst_21 : f32 to vector<1x256xf32>
        %37 = arith.addf %36, %35 : vector<1x256xf32>
        %38 = tpu.reciprocal %37 {approx = true} : vector<1x256xf32> -> vector<1x256xf32>
        %c0_22 = arith.constant 0 : index
        %c0_23 = arith.constant 0 : index
        %39 = vector.load %arg12[%c0_22, %c0_23] : memref<1x256xf32, #tpu.memory_space<vmem>>, vector<1x256xf32>
        tpu.vector_store %arg12[%c0_22, %c0_23], %38 {strides = array<i32>} : memref<1x256xf32, #tpu.memory_space<vmem>>, vector<1x256xf32>,
      } else {
      }
    } else {
    }
    return
  }
  func.func @transform_0(%arg0: i32, %arg1: i32) -> (i32, i32) {
    %c0_i32 = arith.constant 0 : i32
    %c0_i32_0 = arith.constant 0 : i32
    %c0_i32_1 = arith.constant 0 : i32
    return %c0_i32, %c0_i32_0 : i32, i32
  }
  func.func @transform_1(%arg0: i32, %arg1: i32) -> (i32, i32) {
    %c0_i32 = arith.constant 0 : i32
    %c0_i32_0 = arith.constant 0 : i32
    return %arg1, %c0_i32 : i32, i32
  }
  func.func @transform_2(%arg0: i32, %arg1: i32) -> (i32, i32) {
    %c0_i32 = arith.constant 0 : i32
    %c0_i32_0 = arith.constant 0 : i32
    %c0_i32_1 = arith.constant 0 : i32
    return %c0_i32, %c0_i32_0 : i32, i32
  }
  func.func @transform_3(%arg0: i32, %arg1: i32) -> (i32, i32) {
    %c0_i32 = arith.constant 0 : i32
    %c0_i32_0 = arith.constant 0 : i32
    %c0_i32_1 = arith.constant 0 : i32
    return %c0_i32, %c0_i32_0 : i32, i32
  }
  func.func @transform_4(%arg0: i32, %arg1: i32) -> (i32, i32) {
    %c0_i32 = arith.constant 0 : i32
    %c0_i32_0 = arith.constant 0 : i32
    %c0_i32_1 = arith.constant 0 : i32
    return %c0_i32, %c0_i32_0 : i32, i32
  }
  func.func @transform_5(%arg0: i32, %arg1: i32) -> (i32, i32) {
    %c0_i32 = arith.constant 0 : i32
    %c0_i32_0 = arith.constant 0 : i32
    %c0_i32_1 = arith.constant 0 : i32
    return %c0_i32, %c0_i32_0 : i32, i32
  }
  func.func @transform_6(%arg0: i32, %arg1: i32) -> (i32, i32) {
    %c0_i32 = arith.constant 0 : i32
    %c0_i32_0 = arith.constant 0 : i32
    %c0_i32_1 = arith.constant 0 : i32
    return %c0_i32, %c0_i32_0 : i32, i32
  }
  func.func @transform_7(%arg0: i32, %arg1: i32) -> (i32, i32) {
    %c0_i32 = arith.constant 0 : i32
    %c0_i32_0 = arith.constant 0 : i32
    %c0_i32_1 = arith.constant 0 : i32
    return %c0_i32, %c0_i32_0 : i32, i32
  }
  func.func @transform_8(%arg0: i32, %arg1: i32) -> (i32, i32) {
    %c0_i32 = arith.constant 0 : i32
    %c0_i32_0 = arith.constant 0 : i32
    %c0_i32_1 = arith.constant 0 : i32
    return %c0_i32, %c0_i32_0 : i32, i32
  }
  func.func @transform_9(%arg0: i32, %arg1: i32) -> (i32, i32) {
    %c0_i32 = arith.constant 0 : i32
    %c0_i32_0 = arith.constant 0 : i32
    %c0_i32_1 = arith.constant 0 : i32
    return %c0_i32, %c0_i32_0 : i32, i32
  }
  func.func @transform_10(%arg0: i32, %arg1: i32) -> (i32, i32) {
    %c0_i32 = arith.constant 0 : i32
    %c0_i32_0 = arith.constant 0 : i32
    %c0_i32_1 = arith.constant 0 : i32
    return %c0_i32, %c0_i32_0 : i32, i32
  }
}

</mosaic_0001>

<llo_original>
// kernel: tpu_custom_call.1
$region0: #{tpu_custom_call.1}
  #allocation0 [shape = 'u32[]', space=smem, size = 0x4, offset = 0x4, fixed_abs, tag = 'smem constant byte address 0x4 - core index']
  #allocation1 [shape = 'u32[144,128]{1,0:T(1,128)}', space=vmem, size = 0x12000, scoped, tag = 'internal scratch']
  #allocation2 [shape = 'bf16[16,256]{1,0:T(8,128)(2,1)}', space=vmem, size = 0x2000, scoped, tag = 'scratch operand']
  #allocation3 [shape = 'f32[16,256]{1,0:T(8,128)}', space=vmem, size = 0x4000, scoped, tag = 'scratch operand']
  #allocation4 [shape = 'f32[1,1]{1,0:T(1,128)S(1)}', space=vmem, size = 0x200, scoped, tag = 'scoped memory for tpu_custom_call.1']
  %s0 = inlined_call_operand.vmem [shape: bf16[8,256], index: 0, kind: input, shape index: {}]
  %s1 = inlined_call_operand.hbm [shape: bf16[256,256], index: 1, kind: input, shape index: {}]
  %s2 = inlined_call_operand.vmem [shape: bf16[16,8], index: 2, kind: input, shape index: {}]
  %s3 = inlined_call_operand.vmem [shape: f32[16,1], index: 3, kind: input, shape index: {}]
  %s4 = inlined_call_operand.vmem [shape: f32[16,1], index: 4, kind: input, shape index: {}]
  %s5 = inlined_call_operand.vmem [shape: f32[16,16], index: 5, kind: input, shape index: {}]
  %s6 = inlined_call_operand.vmem [shape: f32[16,1], index: 6, kind: input, shape index: {}]
  %s7 = inlined_call_operand.vmem [shape: f32[16,1], index: 7, kind: input, shape index: {}]
  %s8 = inlined_call_operand.vmem [shape: f32[16,16], index: 8, kind: input, shape index: {}]
  %s9 = inlined_call_operand.<no memory space> [shape: f32[1,1], index: 9, kind: input, shape index: {}]
  %s10 = inlined_call_operand.hbm [shape: f32[1,256], index: 10, kind: output, shape index: {}]
  %s11 = sld [smem:[#allocation0]]
  $region101: #{tpu_custom_call.1} parent=0
    _
  %s13 = ssub.s32 1, %s11
  %s14 = scalar_select 0, %s13, %s11
  %v15 = vstv %s9
  %16 = vst [vmem:[#allocation4] sm:$0x1] %v15
  $region1: #{tpu_custom_call.1} parent=0
    #allocation5 [shape = 'u8[131072]{0}', space=vmem, size = 0x20000, scoped, tag = 'input window, operand 1, single buffered']
    #allocation6 [shape = 's32[2]{0}', space=sflag, size = 0x8, scoped, tag = 'scoped memory for tpu_custom_call.1']
    #allocation7 [shape = 's32[2]{0}', space=sflag, size = 0x8, scoped, tag = 'scoped memory for tpu_custom_call.1']
    #allocation8 [shape = 'u8[1024]{0}', space=vmem, size = 0x400, scoped, tag = 'output window, operand 0, single buffered']
    %17 = vsyncpa [#allocation6], 0
    %18 = vsyncpa [#allocation7], 0
    loop: start=0, step=1, limit=5
    $region2: #{tpu_custom_call.1} parent=1 // loop_pre_header
      _
    $region3: #{tpu_custom_call.1} parent=1 // loop_header
      %s20 = sphi 0, %s24
      %p21 = scmp.ge.s32.totalorder %s20, 5
      %s27 = sphi 0, %s39
      %s28 = sphi 0, %s35
      %s29 = sphi 0, %s27
      %s30 = sphi 0, %s28
      %s31 = sphi 0, %s29
      %s32 = sphi 0, %s30
      %s40 = sphi 0, %s40
      %s42 = sphi 0, %s40
      %s43 = sphi 0, %s42
      %s57 = sphi 0, %s43
      %s63 = sphi 0, %s65
      %s66 = sphi 0, %s63
      %s67 = sphi 0, %s66
      %s83 = sphi 0, %s67
      %s87 = sphi 0, %s87
      %s89 = sphi 0, %s87
      %s90 = sphi 0, %s89
      %s104 = sphi 0, %s90
      %s108 = sphi 0, %s108
      %s110 = sphi 0, %s108
      %s111 = sphi 0, %s110
      %s125 = sphi 0, %s111
      %s129 = sphi 0, %s129
      %s131 = sphi 0, %s129
      %s132 = sphi 0, %s131
      %s146 = sphi 0, %s132
      %s150 = sphi 0, %s150
      %s152 = sphi 0, %s150
      %s153 = sphi 0, %s152
      %s167 = sphi 0, %s153
      %s171 = sphi 0, %s171
      %s173 = sphi 0, %s171
      %s174 = sphi 0, %s173
      %s188 = sphi 0, %s174
      %s192 = sphi 0, %s192
      %s194 = sphi 0, %s192
      %s195 = sphi 0, %s194
      %s209 = sphi 0, %s195
      %s213 = sphi 0, %s213
      %s215 = sphi 0, %s213
      %s216 = sphi 0, %s215
      %s230 = sphi 0, %s216
      %s234 = sphi 0, %s234
      %s236 = sphi 0, %s234
      %s237 = sphi 0, %s236
      %s251 = sphi 0, %s237
      %s255 = sphi 0, %s255
      %s257 = sphi 0, %s255
      %s258 = sphi 0, %s257
      %s272 = sphi 0, %s258
    $region4: #{tpu_custom_call.1} parent=1 // loop_header_branch
      %23 = sbr.rel (%p21) target = $region8
    $region5: #{tpu_custom_call.1} parent=1 // loop_body
      %s25 = ssub.s32 %s20, 1
      %s26 = ssub.s32 %s20, 2
      %s33 = sadd.s32 1, %s28
      %p34 = scmp.ge.s32.totalorder %s33, 1
      %s35 = scalar_select %p34, 0, %s33
      %s36 = sadd.s32 1, %s27
      %s37 = scalar_select %p34, %s36, %s27
      %p38 = scmp.ge.s32.totalorder %s37, 3
      %s39 = scalar_select %p38, 0, %s37
      %s41 = sadd.s32 %s40, 1
      %p44 = scmp.eq.s32.totalorder %s20, 2
      %p45 = scmp.ne.s32.totalorder %s40, %s42
      %p46 = scmp.eq.s32.totalorder %s20, 0
      %p47 = por %p45, %p46
      %p48 = scmp.ne.s32.totalorder %s40, %s42
      %p49 = scmp.eq.s32.totalorder %s25, 2
      %p50 = por %p48, %p49
      %p51 = scmp.ne.s32.totalorder %s42, %s43
      %p52 = scmp.eq.s32.totalorder %s25, 0
      %p53 = por %p51, %p52
      %p54 = scmp.ne.s32.totalorder %s42, %s43
      %p55 = scmp.eq.s32.totalorder %s26, 2
      %p56 = por %p54, %p55
      %p58 = scmp.ne.s32.totalorder %s43, %s57
      %p59 = scmp.eq.s32.totalorder %s26, 0
      %p60 = por %p58, %p59
      %s61 = ssub.s32 %s28, %s35
      %p62 = scmp.eq.s32.totalorder %s61, 0
      %s64 = sadd.s32 %s63, 1
      %s65 = scalar_select %p62, %s63, %s64
      %p68 = pneg %p62
      %p69 = scmp.eq.s32.totalorder %s20, 2
      %p70 = por %p68, %p69
      %p71 = scmp.ne.s32.totalorder %s63, %s66
      %p72 = scmp.eq.s32.totalorder %s20, 0
      %p73 = por %p71, %p72
      %p74 = scmp.ne.s32.totalorder %s63, %s66
      %p75 = scmp.eq.s32.totalorder %s25, 2
      %p76 = por %p74, %p75
      %p77 = scmp.ne.s32.totalorder %s66, %s67
      %p78 = scmp.eq.s32.totalorder %s25, 0
      %p79 = por %p77, %p78
      %p80 = scmp.ne.s32.totalorder %s66, %s67
      %p81 = scmp.eq.s32.totalorder %s26, 2
      %p82 = por %p80, %p81
      %p84 = scmp.ne.s32.totalorder %s67, %s83
      %p85 = scmp.eq.s32.totalorder %s26, 0
      %p86 = por %p84, %p85
      %s88 = sadd.s32 %s87, 1
      %p91 = scmp.eq.s32.totalorder %s20, 2
      %p92 = scmp.ne.s32.totalorder %s87, %s89
      %p93 = scmp.eq.s32.totalorder %s20, 0
      %p94 = por %p92, %p93
      %p95 = scmp.ne.s32.totalorder %s87, %s89
      %p96 = scmp.eq.s32.totalorder %s25, 2
      %p97 = por %p95, %p96
      %p98 = scmp.ne.s32.totalorder %s89, %s90
      %p99 = scmp.eq.s32.totalorder %s25, 0
      %p100 = por %p98, %p99
      %p101 = scmp.ne.s32.totalorder %s89, %s90
      %p102 = scmp.eq.s32.totalorder %s26, 2
      %p103 = por %p101, %p102
      %p105 = scmp.ne.s32.totalorder %s90, %s104
      %p106 = scmp.eq.s32.totalorder %s26, 0
      %p107 = por %p105, %p106
      %s109 = sadd.s32 %s108, 1
      %p112 = scmp.eq.s32.totalorder %s20, 2
      %p113 = scmp.ne.s32.totalorder %s108, %s110
      %p114 = scmp.eq.s32.totalorder %s20, 0
      %p115 = por %p113, %p114
      %p116 = scmp.ne.s32.totalorder %s108, %s110
      %p117 = scmp.eq.s32.totalorder %s25, 2
      %p118 = por %p116, %p117
      %p119 = scmp.ne.s32.totalorder %s110, %s111
      %p120 = scmp.eq.s32.totalorder %s25, 0
      %p121 = por %p119, %p120
      %p122 = scmp.ne.s32.totalorder %s110, %s111
      %p123 = scmp.eq.s32.totalorder %s26, 2
      %p124 = por %p122, %p123
      %p126 = scmp.ne.s32.totalorder %s111, %s125
      %p127 = scmp.eq.s32.totalorder %s26, 0
      %p128 = por %p126, %p127
      %s130 = sadd.s32 %s129, 1
      %p133 = scmp.eq.s32.totalorder %s20, 2
      %p134 = scmp.ne.s32.totalorder %s129, %s131
      %p135 = scmp.eq.s32.totalorder %s20, 0
      %p136 = por %p134, %p135
      %p137 = scmp.ne.s32.totalorder %s129, %s131
      %p138 = scmp.eq.s32.totalorder %s25, 2
      %p139 = por %p137, %p138
      %p140 = scmp.ne.s32.totalorder %s131, %s132
      %p141 = scmp.eq.s32.totalorder %s25, 0
      %p142 = por %p140, %p141
      %p143 = scmp.ne.s32.totalorder %s131, %s132
      %p144 = scmp.eq.s32.totalorder %s26, 2
      %p145 = por %p143, %p144
      %p147 = scmp.ne.s32.totalorder %s132, %s146
      %p148 = scmp.eq.s32.totalorder %s26, 0
      %p149 = por %p147, %p148
      %s151 = sadd.s32 %s150, 1
      %p154 = scmp.eq.s32.totalorder %s20, 2
      %p155 = scmp.ne.s32.totalorder %s150, %s152
      %p156 = scmp.eq.s32.totalorder %s20, 0
      %p157 = por %p155, %p156
      %p158 = scmp.ne.s32.totalorder %s150, %s152
      %p159 = scmp.eq.s32.totalorder %s25, 2
      %p160 = por %p158, %p159
      %p161 = scmp.ne.s32.totalorder %s152, %s153
      %p162 = scmp.eq.s32.totalorder %s25, 0
      %p163 = por %p161, %p162
      %p164 = scmp.ne.s32.totalorder %s152, %s153
      %p165 = scmp.eq.s32.totalorder %s26, 2
      %p166 = por %p164, %p165
      %p168 = scmp.ne.s32.totalorder %s153, %s167
      %p169 = scmp.eq.s32.totalorder %s26, 0
      %p170 = por %p168, %p169
      %s172 = sadd.s32 %s171, 1
      %p175 = scmp.eq.s32.totalorder %s20, 2
      %p176 = scmp.ne.s32.totalorder %s171, %s173
      %p177 = scmp.eq.s32.totalorder %s20, 0
      %p178 = por %p176, %p177
      %p179 = scmp.ne.s32.totalorder %s171, %s173
      %p180 = scmp.eq.s32.totalorder %s25, 2
      %p181 = por %p179, %p180
      %p182 = scmp.ne.s32.totalorder %s173, %s174
      %p183 = scmp.eq.s32.totalorder %s25, 0
      %p184 = por %p182, %p183
      %p185 = scmp.ne.s32.totalorder %s173, %s174
      %p186 = scmp.eq.s32.totalorder %s26, 2
      %p187 = por %p185, %p186
      %p189 = scmp.ne.s32.totalorder %s174, %s188
      %p190 = scmp.eq.s32.totalorder %s26, 0
      %p191 = por %p189, %p190
      %s193 = sadd.s32 %s192, 1
      %p196 = scmp.eq.s32.totalorder %s20, 2
      %p197 = scmp.ne.s32.totalorder %s192, %s194
      %p198 = scmp.eq.s32.totalorder %s20, 0
      %p199 = por %p197, %p198
      %p200 = scmp.ne.s32.totalorder %s192, %s194
      %p201 = scmp.eq.s32.totalorder %s25, 2
      %p202 = por %p200, %p201
      %p203 = scmp.ne.s32.totalorder %s194, %s195
      %p204 = scmp.eq.s32.totalorder %s25, 0
      %p205 = por %p203, %p204
      %p206 = scmp.ne.s32.totalorder %s194, %s195
      %p207 = scmp.eq.s32.totalorder %s26, 2
      %p208 = por %p206, %p207
      %p210 = scmp.ne.s32.totalorder %s195, %s209
      %p211 = scmp.eq.s32.totalorder %s26, 0
      %p212 = por %p210, %p211
      %s214 = sadd.s32 %s213, 1
      %p217 = scmp.eq.s32.totalorder %s20, 2
      %p218 = scmp.ne.s32.totalorder %s213, %s215
      %p219 = scmp.eq.s32.totalorder %s20, 0
      %p220 = por %p218, %p219
      %p221 = scmp.ne.s32.totalorder %s213, %s215
      %p222 = scmp.eq.s32.totalorder %s25, 2
      %p223 = por %p221, %p222
      %p224 = scmp.ne.s32.totalorder %s215, %s216
      %p225 = scmp.eq.s32.totalorder %s25, 0
      %p226 = por %p224, %p225
      %p227 = scmp.ne.s32.totalorder %s215, %s216
      %p228 = scmp.eq.s32.totalorder %s26, 2
      %p229 = por %p227, %p228
      %p231 = scmp.ne.s32.totalorder %s216, %s230
      %p232 = scmp.eq.s32.totalorder %s26, 0
      %p233 = por %p231, %p232
      %s235 = sadd.s32 %s234, 1
      %p238 = scmp.eq.s32.totalorder %s20, 2
      %p239 = scmp.ne.s32.totalorder %s234, %s236
      %p240 = scmp.eq.s32.totalorder %s20, 0
      %p241 = por %p239, %p240
      %p242 = scmp.ne.s32.totalorder %s234, %s236
      %p243 = scmp.eq.s32.totalorder %s25, 2
      %p244 = por %p242, %p243
      %p245 = scmp.ne.s32.totalorder %s236, %s237
      %p246 = scmp.eq.s32.totalorder %s25, 0
      %p247 = por %p245, %p246
      %p248 = scmp.ne.s32.totalorder %s236, %s237
      %p249 = scmp.eq.s32.totalorder %s26, 2
      %p250 = por %p248, %p249
      %p252 = scmp.ne.s32.totalorder %s237, %s251
      %p253 = scmp.eq.s32.totalorder %s26, 0
      %p254 = por %p252, %p253
      %s256 = sadd.s32 %s255, 1
      %p259 = scmp.eq.s32.totalorder %s20, 2
      %p260 = scmp.ne.s32.totalorder %s255, %s257
      %p261 = scmp.eq.s32.totalorder %s20, 0
      %p262 = por %p260, %p261
      %p263 = scmp.ne.s32.totalorder %s255, %s257
      %p264 = scmp.eq.s32.totalorder %s25, 2
      %p265 = por %p263, %p264
      %p266 = scmp.ne.s32.totalorder %s257, %s258
      %p267 = scmp.eq.s32.totalorder %s25, 0
      %p268 = por %p266, %p267
      %p269 = scmp.ne.s32.totalorder %s257, %s258
      %p270 = scmp.eq.s32.totalorder %s26, 2
      %p271 = por %p269, %p270
      %p273 = scmp.ne.s32.totalorder %s258, %s272
      %p274 = scmp.eq.s32.totalorder %s26, 0
      %p275 = por %p273, %p274
      %p276 = scmp.le.s32.totalorder 1, %s20
      %p277 = scmp.lt.s32.totalorder %s20, 4
      %p278 = pnand %p276, %p277
      %p279 = pneg %p278
      // Predicated region
      $region9: #{tpu_custom_call.1} parent=5 // pred_check
        _
      $region10: #{tpu_custom_call.1} parent=5 // pred_check_branch
        %281 = sbr.rel (%p278) target = $region12
      $region11: #{tpu_custom_call.1} parent=5 // pred_region
        %s282 = ssub.s32 %s20, 1
        // Predicated region
        $region13: #{tpu_custom_call.1} parent=11 // pred_check
          %p283 = pneg %p53
        $region14: #{tpu_custom_call.1} parent=11 // pred_check_branch
          %285 = sbr.rel (%p283) target = $region16
        $region15: #{tpu_custom_call.1} parent=11 // pred_region
          _
        $region16: #{tpu_custom_call.1} parent=11 // pred_fallthru
          _
        // Predicated region
        $region17: #{tpu_custom_call.1} parent=11 // pred_check
          %p286 = pneg %p79
        $region18: #{tpu_custom_call.1} parent=11 // pred_check_branch
          %288 = sbr.rel (%p286) target = $region20
        $region19: #{tpu_custom_call.1} parent=11 // pred_region
          %s289 = smul.u32 32, %s30
          %s291 = ssub.s32 4096, 4096
          %292 = vsyncadd [#allocation6], %s291
          %s293 = smul.addr %s289, 2
          %s294 = smul.addr %s293, 64
          %s295 = scalar_lea.hbm %s1, %s294
          %s296 = sshll.u32 [#allocation5], 4
          %s297 = int_to_ptr.vmem [resolvable:$true] %s296
          %302 = dma.hbm_to_vmem [thread:$0]  %s295, 4096, %s297, [#allocation6], 128, 128, 8
        $region20: #{tpu_custom_call.1} parent=11 // pred_fallthru
          _
        // Predicated region
        $region21: #{tpu_custom_call.1} parent=11 // pred_check
          %p303 = pneg %p100
        $region22: #{tpu_custom_call.1} parent=11 // pred_check_branch
          %305 = sbr.rel (%p303) target = $region24
        $region23: #{tpu_custom_call.1} parent=11 // pred_region
          _
        $region24: #{tpu_custom_call.1} parent=11 // pred_fallthru
          _
        // Predicated region
        $region25: #{tpu_custom_call.1} parent=11 // pred_check
          %p306 = pneg %p121
        $region26: #{tpu_custom_call.1} parent=11 // pred_check_branch
          %308 = sbr.rel (%p306) target = $region28
        $region27: #{tpu_custom_call.1} parent=11 // pred_region
          _
        $region28: #{tpu_custom_call.1} parent=11 // pred_fallthru
          _
        // Predicated region
        $region29: #{tpu_custom_call.1} parent=11 // pred_check
          %p309 = pneg %p142
        $region30: #{tpu_custom_call.1} parent=11 // pred_check_branch
          %311 = sbr.rel (%p309) target = $region32
        $region31: #{tpu_custom_call.1} parent=11 // pred_region
          _
        $region32: #{tpu_custom_call.1} parent=11 // pred_fallthru
          _
        // Predicated region
        $region33: #{tpu_custom_call.1} parent=11 // pred_check
          %p312 = pneg %p163
        $region34: #{tpu_custom_call.1} parent=11 // pred_check_branch
          %314 = sbr.rel (%p312) target = $region36
        $region35: #{tpu_custom_call.1} parent=11 // pred_region
          _
        $region36: #{tpu_custom_call.1} parent=11 // pred_fallthru
          _
        // Predicated region
        $region37: #{tpu_custom_call.1} parent=11 // pred_check
          %p315 = pneg %p184
        $region38: #{tpu_custom_call.1} parent=11 // pred_check_branch
          %317 = sbr.rel (%p315) target = $region40
        $region39: #{tpu_custom_call.1} parent=11 // pred_region
          _
        $region40: #{tpu_custom_call.1} parent=11 // pred_fallthru
          _
        // Predicated region
        $region41: #{tpu_custom_call.1} parent=11 // pred_check
          %p318 = pneg %p205
        $region42: #{tpu_custom_call.1} parent=11 // pred_check_branch
          %320 = sbr.rel (%p318) target = $region44
        $region43: #{tpu_custom_call.1} parent=11 // pred_region
          _
        $region44: #{tpu_custom_call.1} parent=11 // pred_fallthru
          _
        // Predicated region
        $region45: #{tpu_custom_call.1} parent=11 // pred_check
          %p321 = pneg %p226
        $region46: #{tpu_custom_call.1} parent=11 // pred_check_branch
          %323 = sbr.rel (%p321) target = $region48
        $region47: #{tpu_custom_call.1} parent=11 // pred_region
          _
        $region48: #{tpu_custom_call.1} parent=11 // pred_fallthru
          _
        // Predicated region
        $region49: #{tpu_custom_call.1} parent=11 // pred_check
          %p324 = pneg %p247
        $region50: #{tpu_custom_call.1} parent=11 // pred_check_branch
          %326 = sbr.rel (%p324) target = $region52
        $region51: #{tpu_custom_call.1} parent=11 // pred_region
          _
        $region52: #{tpu_custom_call.1} parent=11 // pred_fallthru
          _
      $region12: #{tpu_custom_call.1} parent=5 // pred_fallthru
        _
      %p327 = scmp.lt.s32.totalorder %s20, 3
      // Predicated region
      $region53: #{tpu_custom_call.1} parent=5 // pred_check
        %p328 = pneg %p327
      $region54: #{tpu_custom_call.1} parent=5 // pred_check_branch
        %330 = sbr.rel (%p328) target = $region56
      $region55: #{tpu_custom_call.1} parent=5 // pred_region
        _
      $region56: #{tpu_custom_call.1} parent=5 // pred_fallthru
        _
      %p331 = scmp.le.s32.totalorder 1, %s20
      %p332 = scmp.lt.s32.totalorder %s20, 4
      %p333 = pnand %p331, %p332
      %p334 = pneg %p333
      // Predicated region
      $region57: #{tpu_custom_call.1} parent=5 // pred_check
        _
      $region58: #{tpu_custom_call.1} parent=5 // pred_check_branch
        %336 = sbr.rel (%p333) target = $region60
      $region59: #{tpu_custom_call.1} parent=5 // pred_region
        %s337 = ssub.s32 %s20, 1
        // Predicated region
        $region61: #{tpu_custom_call.1} parent=59 // pred_check
          %p338 = pneg %p79
        $region62: #{tpu_custom_call.1} parent=59 // pred_check_branch
          %340 = sbr.rel (%p338) target = $region64
        $region63: #{tpu_custom_call.1} parent=59 // pred_region
          %341 = dma.done [#allocation6], 4096
        $region64: #{tpu_custom_call.1} parent=59 // pred_fallthru
          _
        %p342 = pneg %p53
        %p343 = pneg %p50
        %p344 = pneg %p79
        %p345 = pneg %p76
        %p346 = pneg %p100
        %p347 = pneg %p97
        %p348 = pneg %p121
        %p349 = pneg %p118
        %p350 = pneg %p142
        %p351 = pneg %p139
        %p352 = pneg %p163
        %p353 = pneg %p160
        %p354 = pneg %p184
        %p355 = pneg %p181
        %p356 = pneg %p205
        %p357 = pneg %p202
        %p358 = pneg %p226
        %p359 = pneg %p223
        %p360 = pneg %p247
        %p361 = pneg %p244
        %p362 = pneg %p268
        %p363 = pneg %p265
        %s364 = smul.u32 32, %s30
        %p366 = scmp.eq.s32.totalorder %s30, 0
        // Predicated region
        $region65: #{tpu_custom_call.1} parent=59 // pred_check
          %p367 = pneg %p366
        $region66: #{tpu_custom_call.1} parent=59 // pred_check_branch
          %369 = sbr.rel (%p367) target = $region68
        $region67: #{tpu_custom_call.1} parent=59 // pred_region
          %370 = vst [vmem:[#allocation3] sm:$0xff] 0.0
          %371 = vst [vmem:[#allocation3 + $0x8] sm:$0xff] 0.0
          %372 = vst [vmem:[#allocation3 + $0x10] sm:$0xff] 0.0
          %373 = vst [vmem:[#allocation3 + $0x18] sm:$0xff] 0.0
        $region68: #{tpu_custom_call.1} parent=59 // pred_fallthru
          _
        %p374 = scmp.eq.s32.totalorder %s29, 0
        %p375 = pnand %p374, %p366
        %p376 = pneg %p375
        // Predicated region
        $region69: #{tpu_custom_call.1} parent=59 // pred_check
          _
        $region70: #{tpu_custom_call.1} parent=59 // pred_check_branch
          %378 = sbr.rel (%p375) target = $region72
        $region71: #{tpu_custom_call.1} parent=59 // pred_region
          %v379 = vld [vmem:[%s2] sm:$0xf]
          %v380 = vld [vmem:[%s2 + $0x4] sm:$0xf]
          %v381 = vld [vmem:[%s0] sm:$0xff]
          %v384 = vunpack.c.l.b16 %v379
          %v385 = vunpack.c.l.b16 %v380
          %v386 = vpack.c.b16 %v385, %v384
          %v388 = vunpack.c.l.b16 %v381
          %v389 = vunpack.c.h.b16 %v381
          %v390 = vpack.c.b16 %v388, %v388
          %v391 = vpack.c.b16 %v389, %v389
          %vm392 = vcmask 64512
          %v394 = vsel %vm392, %v386, 0
          %vm396 = vcmask 1043456
          %v398 = vsel %vm396, %v390, 0
          %v401 = vsel %vm396, %v391, 0
          %403 = vmatprep.subr.bf16.mxu0 0
          %404 = vmatpush1.bf16.msra.mxu0 0
          %405 = vmatprep.subr.bf16.mxu0 0
          %406 = vmatpush1.bf16.msra.mxu0 0
          %407 = vmatprep.subr.bf16.mxu0 0
          %408 = vmatpush1.bf16.msra.mxu0 0
          %409 = vmatprep.subr.bf16.mxu0 0
          %410 = vmatpush1.bf16.msra.mxu0 0
          %411 = vmatprep.subr.bf16.mxu0 0
          %412 = vmatpush1.bf16.msra.mxu0 0
          %413 = vmatprep.subr.bf16.mxu0 0
          %414 = vmatpush1.bf16.msra.mxu0 0
          %415 = vmatprep.subr.bf16.mxu0 0
          %416 = vmatpush1.bf16.msra.mxu0 0
          %417 = vmatprep.subr.bf16.mxu0 %v401
          %418 = vmatpush1.bf16.msra.mxu0 %v398
          %419 = vmatprep.subr.bf16.mxu0 0
          %420 = vmatpush2.bf16.msra.mxu0 0
          %421 = vmatprep.subr.bf16.mxu0 0
          %422 = vmatpush2.bf16.msra.mxu0 0
          %423 = vmatprep.subr.bf16.mxu0 0
          %424 = vmatpush2.bf16.msra.mxu0 0
          %425 = vmatprep.subr.bf16.mxu0 0
          %426 = vmatpush2.bf16.msra.mxu0 0
          %427 = vmatprep.subr.bf16.mxu0 0
          %428 = vmatpush2.bf16.msra.mxu0 0
          %429 = vmatprep.subr.bf16.mxu0 0
          %430 = vmatpush2.bf16.msra.mxu0 0
          %431 = vmatprep.subr.bf16.mxu0 0
          %432 = vmatpush2.bf16.msra.mxu0 0
          %433 = vmatprep.subr.bf16.mxu0 0
          %434 = vmatpush2.bf16.msra.mxu0 0
          %435 = vmatprep.mubr.bf16.mxu0 0
          %436 = vmatmul.mubr.bf16.gmra.mxu0 %v394
          %v437 = vpop.f32.mrf.mxu0
          %v438 = vadd.f32 0.0, %v437
          %v439 = vpop.f32.mrf.mxu0
          %v440 = vadd.f32 0.0, %v439
          %v441 = vpop.f32.mrf.mxu0
          %v442 = vadd.f32 0.0, %v441
          %v443 = vpop.f32.mrf.mxu0
          %v444 = vadd.f32 0.0, %v443
          %445 = vdwg.mxu0
          %v446 = vpack.c.bf16 %v442, %v438
          %v447 = vpack.c.bf16 %v444, %v440
          %v450 = vunpack.c.l.b16 %v446
          %v451 = vunpack.c.l.b16 %v447
          %v452 = vunpack.c.h.b16 %v446
          %v453 = vunpack.c.h.b16 %v447
          %v454 = vpack.c.b16 %v451, %v450
          %v455 = vpack.c.b16 %v453, %v452
          %458 = vst [vmem:[#allocation2] sm:$0xff] %v454
          %459 = vst [vmem:[#allocation2 + $0x8] sm:$0xff] %v455
        $region72: #{tpu_custom_call.1} parent=59 // pred_fallthru
          _
        %s460 = smul.u32 %s30, 256
        %v461 = vld [vmem:[#allocation3] sm:$0xff]
        %v462 = vld [vmem:[#allocation3 + $0x8] sm:$0xff]
        %v463 = vld [vmem:[#allocation3 + $0x10] sm:$0xff]
        %v464 = vld [vmem:[#allocation3 + $0x18] sm:$0xff]
        %s465 = sshra.s32 %s460, 7
        %s466 = sand.u32 %s460, 127
        %s467 = smul.addr %s465, 4
        %s468 = scalar_lea.vmem [#allocation2], %s467
        %v469 = vld [vmem:[%s468] sm:$0xff]
        %v470 = vld [vmem:[%s468 + $0x8] sm:$0xff]
        %v471 = vld [vmem:[#allocation5] sm:$0xff]
        %v472 = vld [vmem:[#allocation5 + $0x8] sm:$0xff]
        %v473 = vld [vmem:[#allocation5 + $0x10] sm:$0xff]
        %v474 = vld [vmem:[#allocation5 + $0x18] sm:$0xff]
        %v475 = vld [vmem:[#allocation5 + $0x20] sm:$0xff]
        %v476 = vld [vmem:[#allocation5 + $0x28] sm:$0xff]
        %v477 = vld [vmem:[#allocation5 + $0x30] sm:$0xff]
        %v478 = vld [vmem:[#allocation5 + $0x38] sm:$0xff]
        %v479 = vld [vmem:[#allocation5 + $0x40] sm:$0xff]
        %v480 = vld [vmem:[#allocation5 + $0x48] sm:$0xff]
        %v481 = vld [vmem:[#allocation5 + $0x50] sm:$0xff]
        %v482 = vld [vmem:[#allocation5 + $0x58] sm:$0xff]
        %v483 = vld [vmem:[#allocation5 + $0x60] sm:$0xff]
        %v484 = vld [vmem:[#allocation5 + $0x68] sm:$0xff]
        %v485 = vld [vmem:[#allocation5 + $0x70] sm:$0xff]
        %v486 = vld [vmem:[#allocation5 + $0x78] sm:$0xff]
        %v487 = vld [vmem:[#allocation5 + $0x80] sm:$0xff]
        %v488 = vld [vmem:[#allocation5 + $0x88] sm:$0xff]
        %v489 = vld [vmem:[#allocation5 + $0x90] sm:$0xff]
        %v490 = vld [vmem:[#allocation5 + $0x98] sm:$0xff]
        %v491 = vld [vmem:[#allocation5 + $0xa0] sm:$0xff]
        %v492 = vld [vmem:[#allocation5 + $0xa8] sm:$0xff]
        %v493 = vld [vmem:[#allocation5 + $0xb0] sm:$0xff]
        %v494 = vld [vmem:[#allocation5 + $0xb8] sm:$0xff]
        %v495 = vld [vmem:[#allocation5 + $0xc0] sm:$0xff]
        %v496 = vld [vmem:[#allocation5 + $0xc8] sm:$0xff]
        %v497 = vld [vmem:[#allocation5 + $0xd0] sm:$0xff]
        %v498 = vld [vmem:[#allocation5 + $0xd8] sm:$0xff]
        %v499 = vld [vmem:[#allocation5 + $0xe0] sm:$0xff]
        %v500 = vld [vmem:[#allocation5 + $0xe8] sm:$0xff]
        %v501 = vld [vmem:[#allocation5 + $0xf0] sm:$0xff]
        %v502 = vld [vmem:[#allocation5 + $0xf8] sm:$0xff]
        %v505 = vunpack.c.l.b16 %v469
        %v506 = vunpack.c.h.b16 %v469
        %v507 = vunpack.c.l.b16 %v470
        %v508 = vunpack.c.h.b16 %v470
        %v509 = vpack.c.b16 %v507, %v505
        %v510 = vpack.c.b16 %v508, %v506
        %v545 = vunpack.c.l.b16 %v471
        %v546 = vunpack.c.h.b16 %v471
        %v547 = vunpack.c.l.b16 %v472
        %v548 = vunpack.c.h.b16 %v472
        %v549 = vunpack.c.l.b16 %v473
        %v550 = vunpack.c.h.b16 %v473
        %v551 = vunpack.c.l.b16 %v474
        %v552 = vunpack.c.h.b16 %v474
        %v553 = vunpack.c.l.b16 %v475
        %v554 = vunpack.c.h.b16 %v475
        %v555 = vunpack.c.l.b16 %v476
        %v556 = vunpack.c.h.b16 %v476
        %v557 = vunpack.c.l.b16 %v477
        %v558 = vunpack.c.h.b16 %v477
        %v559 = vunpack.c.l.b16 %v478
        %v560 = vunpack.c.h.b16 %v478
        %v561 = vunpack.c.l.b16 %v479
        %v562 = vunpack.c.h.b16 %v479
        %v563 = vunpack.c.l.b16 %v480
        %v564 = vunpack.c.h.b16 %v480
        %v565 = vunpack.c.l.b16 %v481
        %v566 = vunpack.c.h.b16 %v481
        %v567 = vunpack.c.l.b16 %v482
        %v568 = vunpack.c.h.b16 %v482
        %v569 = vunpack.c.l.b16 %v483
        %v570 = vunpack.c.h.b16 %v483
        %v571 = vunpack.c.l.b16 %v484
        %v572 = vunpack.c.h.b16 %v484
        %v573 = vunpack.c.l.b16 %v485
        %v574 = vunpack.c.h.b16 %v485
        %v575 = vunpack.c.l.b16 %v486
        %v576 = vunpack.c.h.b16 %v486
        %v577 = vunpack.c.l.b16 %v487
        %v578 = vunpack.c.h.b16 %v487
        %v579 = vunpack.c.l.b16 %v488
        %v580 = vunpack.c.h.b16 %v488
        %v581 = vunpack.c.l.b16 %v489
        %v582 = vunpack.c.h.b16 %v489
        %v583 = vunpack.c.l.b16 %v490
        %v584 = vunpack.c.h.b16 %v490
        %v585 = vunpack.c.l.b16 %v491
        %v586 = vunpack.c.h.b16 %v491
        %v587 = vunpack.c.l.b16 %v492
        %v588 = vunpack.c.h.b16 %v492
        %v589 = vunpack.c.l.b16 %v493
        %v590 = vunpack.c.h.b16 %v493
        %v591 = vunpack.c.l.b16 %v494
        %v592 = vunpack.c.h.b16 %v494
        %v593 = vunpack.c.l.b16 %v495
        %v594 = vunpack.c.h.b16 %v495
        %v595 = vunpack.c.l.b16 %v496
        %v596 = vunpack.c.h.b16 %v496
        %v597 = vunpack.c.l.b16 %v497
        %v598 = vunpack.c.h.b16 %v497
        %v599 = vunpack.c.l.b16 %v498
        %v600 = vunpack.c.h.b16 %v498
        %v601 = vunpack.c.l.b16 %v499
        %v602 = vunpack.c.h.b16 %v499
        %v603 = vunpack.c.l.b16 %v500
        %v604 = vunpack.c.h.b16 %v500
        %v605 = vunpack.c.l.b16 %v501
        %v606 = vunpack.c.h.b16 %v501
        %v607 = vunpack.c.l.b16 %v502
        %v608 = vunpack.c.h.b16 %v502
        %v609 = vpack.c.b16 %v547, %v545
        %v610 = vpack.c.b16 %v548, %v546
        %v611 = vpack.c.b16 %v551, %v549
        %v612 = vpack.c.b16 %v552, %v550
        %v613 = vpack.c.b16 %v555, %v553
        %v614 = vpack.c.b16 %v556, %v554
        %v615 = vpack.c.b16 %v559, %v557
        %v616 = vpack.c.b16 %v560, %v558
        %v617 = vpack.c.b16 %v563, %v561
        %v618 = vpack.c.b16 %v564, %v562
        %v619 = vpack.c.b16 %v567, %v565
        %v620 = vpack.c.b16 %v568, %v566
        %v621 = vpack.c.b16 %v571, %v569
        %v622 = vpack.c.b16 %v572, %v570
        %v623 = vpack.c.b16 %v575, %v573
        %v624 = vpack.c.b16 %v576, %v574
        %v625 = vpack.c.b16 %v579, %v577
        %v626 = vpack.c.b16 %v580, %v578
        %v627 = vpack.c.b16 %v583, %v581
        %v628 = vpack.c.b16 %v584, %v582
        %v629 = vpack.c.b16 %v587, %v585
        %v630 = vpack.c.b16 %v588, %v586
        %v631 = vpack.c.b16 %v591, %v589
        %v632 = vpack.c.b16 %v592, %v590
        %v633 = vpack.c.b16 %v595, %v593
        %v634 = vpack.c.b16 %v596, %v594
        %v635 = vpack.c.b16 %v599, %v597
        %v636 = vpack.c.b16 %v600, %v598
        %v637 = vpack.c.b16 %v603, %v601
        %v638 = vpack.c.b16 %v604, %v602
        %v639 = vpack.c.b16 %v607, %v605
        %v640 = vpack.c.b16 %v608, %v606
        %673 = vmatprep.subr.bf16.mxu0 %v624
        %674 = vmatpush1.bf16.msra.mxu0 %v623
        %675 = vmatprep.subr.bf16.mxu0 %v622
        %676 = vmatpush1.bf16.msra.mxu0 %v621
        %677 = vmatprep.subr.bf16.mxu0 %v620
        %678 = vmatpush1.bf16.msra.mxu0 %v619
        %679 = vmatprep.subr.bf16.mxu0 %v618
        %680 = vmatpush1.bf16.msra.mxu0 %v617
        %681 = vmatprep.subr.bf16.mxu0 %v616
        %682 = vmatpush1.bf16.msra.mxu0 %v615
        %683 = vmatprep.subr.bf16.mxu0 %v614
        %684 = vmatpush1.bf16.msra.mxu0 %v613
        %685 = vmatprep.subr.bf16.mxu0 %v612
        %686 = vmatpush1.bf16.msra.mxu0 %v611
        %687 = vmatprep.subr.bf16.mxu0 %v610
        %688 = vmatpush1.bf16.msra.mxu0 %v609
        %689 = vmatprep.subr.bf16.mxu0 %v640
        %690 = vmatpush2.bf16.msra.mxu0 %v639
        %691 = vmatprep.subr.bf16.mxu0 %v638
        %692 = vmatpush2.bf16.msra.mxu0 %v637
        %693 = vmatprep.subr.bf16.mxu0 %v636
        %694 = vmatpush2.bf16.msra.mxu0 %v635
        %695 = vmatprep.subr.bf16.mxu0 %v634
        %696 = vmatpush2.bf16.msra.mxu0 %v633
        %697 = vmatprep.subr.bf16.mxu0 %v632
        %698 = vmatpush2.bf16.msra.mxu0 %v631
        %699 = vmatprep.subr.bf16.mxu0 %v630
        %700 = vmatpush2.bf16.msra.mxu0 %v629
        %701 = vmatprep.subr.bf16.mxu0 %v628
        %702 = vmatpush2.bf16.msra.mxu0 %v627
        %703 = vmatprep.subr.bf16.mxu0 %v626
        %704 = vmatpush2.bf16.msra.mxu0 %v625
        %705 = vmatprep.mubr.bf16.mxu0 %v510
        %706 = vmatmul.mubr.bf16.gmra.mxu0 %v509
        %v707 = vpop.f32.mrf.mxu0
        %v708 = vadd.f32 0.0, %v707
        %v709 = vpop.f32.mrf.mxu0
        %v710 = vadd.f32 0.0, %v709
        %v711 = vpop.f32.mrf.mxu0
        %v712 = vadd.f32 0.0, %v711
        %v713 = vpop.f32.mrf.mxu0
        %v714 = vadd.f32 0.0, %v713
        %715 = vdwg.mxu0
        %v716 = vadd.f32 %v461, %v708
        %v717 = vadd.f32 %v462, %v710
        %v718 = vadd.f32 %v463, %v712
        %v719 = vadd.f32 %v464, %v714
        %720 = vst [vmem:[#allocation3] sm:$0xff] %v716
        %721 = vst [vmem:[#allocation3 + $0x8] sm:$0xff] %v717
        %722 = vst [vmem:[#allocation3 + $0x10] sm:$0xff] %v718
        %723 = vst [vmem:[#allocation3 + $0x18] sm:$0xff] %v719
        // Predicated region
        $region73: #{tpu_custom_call.1} parent=59 // pred_check
          %p724 = pneg %p366
        $region74: #{tpu_custom_call.1} parent=59 // pred_check_branch
          %726 = sbr.rel (%p724) target = $region76
        $region75: #{tpu_custom_call.1} parent=59 // pred_region
          // Predicated region
          $region77: #{tpu_custom_call.1} parent=75 // pred_check
            %p727 = pneg %p374
          $region78: #{tpu_custom_call.1} parent=75 // pred_check_branch
            %729 = sbr.rel (%p727) target = $region80
          $region79: #{tpu_custom_call.1} parent=75 // pred_region
            %v730 = vld [vmem:[#allocation3] sm:$0xff]
            %v731 = vld [vmem:[#allocation3 + $0x8] sm:$0xff]
            %v732 = vld [vmem:[#allocation3 + $0x10] sm:$0xff]
            %v733 = vld [vmem:[#allocation3 + $0x18] sm:$0xff]
            %v734 = vadd.f32 %v730, %v731
            %735 = vadd.xlane.f32.xlu0 %v734
            %v736 = vpop.xlane.xlu0 %735
            %v737 = vadd.f32 %v732, %v733
            %738 = vadd.xlane.f32.xlu0 %v737
            %v739 = vpop.xlane.xlu0 %738
            %v740 = vmul.f32 %v736, 0.00390625
            %v741 = vmul.f32 %v739, 0.00390625
            %v742 = vmul.f32 %v730, %v730
            %v743 = vmul.f32 %v731, %v731
            %v744 = vmul.f32 %v732, %v732
            %v745 = vmul.f32 %v733, %v733
            %v746 = vadd.f32 %v742, %v743
            %747 = vadd.xlane.f32.xlu0 %v746
            %v748 = vpop.xlane.xlu0 %747
            %v749 = vadd.f32 %v744, %v745
            %750 = vadd.xlane.f32.xlu0 %v749
            %v751 = vpop.xlane.xlu0 %750
            %v752 = vmul.f32 %v748, 0.00390625
            %v753 = vmul.f32 %v751, 0.00390625
            %v754 = vmul.f32 %v740, %v740
            %v755 = vmul.f32 %v741, %v741
            %v756 = vsub.f32 %v752, %v754
            %v757 = vsub.f32 %v753, %v755
            %v758 = vld [vmem:[%s3] sm:$0xff]
            %v759 = vld [vmem:[%s3 + $0x8] sm:$0xff]
            %v760 = vadd.f32 %v756, 1e-05
            %v761 = vadd.f32 %v757, 1e-05
            %v762 = vrsqrt.pop %v760
            %v763 = vrsqrt.pop %v761
            %v764 = vmul.f32 %v758, %v762
            %v765 = vmul.f32 %v759, %v763
            %v766 = vld [vmem:[%s4] sm:$0xff]
            %v767 = vld [vmem:[%s4 + $0x8] sm:$0xff]
            %v768 = vmul.f32 %v740, %v764
            %v769 = vmul.f32 %v741, %v765
            %v770 = vsub.f32 %v766, %v768
            %v771 = vsub.f32 %v767, %v769
            %773 = vset.pattern.permute.xlu0 0
            %774 = vperm.xlu0 %773, %v764
            %v775 = vpop.permute.xlu0 %774
            %778 = vset.pattern.permute.xlu0 0
            %779 = vperm.xlu0 %778, %v765
            %v780 = vpop.permute.xlu0 %779
            %v782 = vmul.f32 %v730, %v775
            %v783 = vmul.f32 %v731, %v775
            %v784 = vmul.f32 %v732, %v780
            %v785 = vmul.f32 %v733, %v780
            %787 = vset.pattern.permute.xlu0 0
            %788 = vperm.xlu0 %787, %v770
            %v789 = vpop.permute.xlu0 %788
            %792 = vset.pattern.permute.xlu0 0
            %793 = vperm.xlu0 %792, %v771
            %v794 = vpop.permute.xlu0 %793
            %v796 = vadd.f32 %v782, %v789
            %v797 = vadd.f32 %v783, %v789
            %v798 = vadd.f32 %v784, %v794
            %v799 = vadd.f32 %v785, %v794
            %v800 = vmax.f32 %v796, 0.0
            %v801 = vmax.f32 %v797, 0.0
            %v802 = vmax.f32 %v798, 0.0
            %v803 = vmax.f32 %v799, 0.0
            %v804 = vld [vmem:[%s5] sm:$0xff]
            %v805 = vld [vmem:[%s5 + $0x8] sm:$0xff]
            %vm806 = vcmask 130048
            %v808 = vsel %vm806, %v804, 0
            %v811 = vsel %vm806, %v805, 0
            %813 = vmatprep.subr.mxu0 0.0
            %814 = vmatpush1.msra.mxu0 0.0
            %815 = vmatprep.subr.mxu0 0.0
            %816 = vmatpush1.msra.mxu0 0.0
            %817 = vmatprep.subr.mxu0 0.0
            %818 = vmatpush1.msra.mxu0 0.0
            %819 = vmatprep.subr.mxu0 0.0
            %820 = vmatpush1.msra.mxu0 0.0
            %821 = vmatprep.subr.mxu0 0.0
            %822 = vmatpush1.msra.mxu0 0.0
            %823 = vmatprep.subr.mxu0 0.0
            %824 = vmatpush1.msra.mxu0 0.0
            %825 = vmatprep.subr.mxu0 0.0
            %826 = vmatpush1.msra.mxu0 0.0
            %827 = vmatprep.subr.mxu0 0.0
            %828 = vmatpush1.msra.mxu0 0.0
            %829 = vmatprep.subr.mxu0 0.0
            %830 = vmatpush1.msra.mxu0 0.0
            %831 = vmatprep.subr.mxu0 0.0
            %832 = vmatpush1.msra.mxu0 0.0
            %833 = vmatprep.subr.mxu0 0.0
            %834 = vmatpush1.msra.mxu0 0.0
            %835 = vmatprep.subr.mxu0 0.0
            %836 = vmatpush1.msra.mxu0 0.0
            %837 = vmatprep.subr.mxu0 0.0
            %838 = vmatpush1.msra.mxu0 0.0
            %839 = vmatprep.subr.mxu0 0.0
            %840 = vmatpush1.msra.mxu0 0.0
            %841 = vmatprep.subr.mxu0 %v803
            %842 = vmatpush1.msra.mxu0 %v802
            %843 = vmatprep.subr.mxu0 %v801
            %844 = vmatpush1.msra.mxu0 %v800
            %845 = vmatprep.subr.mxu0 0.0
            %846 = vmatpush2.msra.mxu0 0.0
            %847 = vmatprep.subr.mxu0 0.0
            %848 = vmatpush2.msra.mxu0 0.0
            %849 = vmatprep.subr.mxu0 0.0
            %850 = vmatpush2.msra.mxu0 0.0
            %851 = vmatprep.subr.mxu0 0.0
            %852 = vmatpush2.msra.mxu0 0.0
            %853 = vmatprep.subr.mxu0 0.0
            %854 = vmatpush2.msra.mxu0 0.0
            %855 = vmatprep.subr.mxu0 0.0
            %856 = vmatpush2.msra.mxu0 0.0
            %857 = vmatprep.subr.mxu0 0.0
            %858 = vmatpush2.msra.mxu0 0.0
            %859 = vmatprep.subr.mxu0 0.0
            %860 = vmatpush2.msra.mxu0 0.0
            %861 = vmatprep.subr.mxu0 0.0
            %862 = vmatpush2.msra.mxu0 0.0
            %863 = vmatprep.subr.mxu0 0.0
            %864 = vmatpush2.msra.mxu0 0.0
            %865 = vmatprep.subr.mxu0 0.0
            %866 = vmatpush2.msra.mxu0 0.0
            %867 = vmatprep.subr.mxu0 0.0
            %868 = vmatpush2.msra.mxu0 0.0
            %869 = vmatprep.subr.mxu0 0.0
            %870 = vmatpush2.msra.mxu0 0.0
            %871 = vmatprep.subr.mxu0 0.0
            %872 = vmatpush2.msra.mxu0 0.0
            %873 = vmatprep.subr.mxu0 0.0
            %874 = vmatpush2.msra.mxu0 0.0
            %875 = vmatprep.subr.mxu0 0.0
            %876 = vmatpush2.msra.mxu0 0.0
            %877 = vmatprep.mubr.f32.mxu0 0.0
            %878 = vmatmul.mubr.f32.gmra.mxu0 %v808
            %v879 = vpop.f32.mrf.mxu0
            %v880 = vadd.f32 0.0, %v879
            %v881 = vpop.f32.mrf.mxu0
            %v882 = vadd.f32 0.0, %v881
            %883 = vmatprep.mubr.f32.mxu0 0.0
            %884 = vmatmul.mubr.f32.gmra.mxu0 %v811
            %v885 = vpop.f32.mrf.mxu0
            %v886 = vadd.f32 0.0, %v885
            %v887 = vpop.f32.mrf.mxu0
            %v888 = vadd.f32 0.0, %v887
            %889 = vdwg.mxu0
            %v890 = vpack.c.bf16 %v886, %v880
            %v891 = vpack.c.bf16 %v888, %v882
            %v894 = vunpack.c.l.b16 %v890
            %v895 = vunpack.c.l.b16 %v891
            %v896 = vunpack.c.h.b16 %v890
            %v897 = vunpack.c.h.b16 %v891
            %v898 = vpack.c.b16 %v895, %v894
            %v899 = vpack.c.b16 %v897, %v896
            %902 = vst [vmem:[#allocation2] sm:$0xff] %v898
            %903 = vst [vmem:[#allocation2 + $0x8] sm:$0xff] %v899
          $region80: #{tpu_custom_call.1} parent=75 // pred_fallthru
            _
          %p904 = scmp.eq.s32.totalorder %s29, 1
          // Predicated region
          $region81: #{tpu_custom_call.1} parent=75 // pred_check
            %p905 = pneg %p904
          $region82: #{tpu_custom_call.1} parent=75 // pred_check_branch
            %907 = sbr.rel (%p905) target = $region84
          $region83: #{tpu_custom_call.1} parent=75 // pred_region
            %v908 = vld [vmem:[#allocation3] sm:$0xff]
            %v909 = vld [vmem:[#allocation3 + $0x8] sm:$0xff]
            %v910 = vld [vmem:[#allocation3 + $0x10] sm:$0xff]
            %v911 = vld [vmem:[#allocation3 + $0x18] sm:$0xff]
            %v912 = vadd.f32 %v908, %v909
            %913 = vadd.xlane.f32.xlu0 %v912
            %v914 = vpop.xlane.xlu0 %913
            %v915 = vadd.f32 %v910, %v911
            %916 = vadd.xlane.f32.xlu0 %v915
            %v917 = vpop.xlane.xlu0 %916
            %v918 = vmul.f32 %v914, 0.00390625
            %v919 = vmul.f32 %v917, 0.00390625
            %v920 = vmul.f32 %v908, %v908
            %v921 = vmul.f32 %v909, %v909
            %v922 = vmul.f32 %v910, %v910
            %v923 = vmul.f32 %v911, %v911
            %v924 = vadd.f32 %v920, %v921
            %925 = vadd.xlane.f32.xlu0 %v924
            %v926 = vpop.xlane.xlu0 %925
            %v927 = vadd.f32 %v922, %v923
            %928 = vadd.xlane.f32.xlu0 %v927
            %v929 = vpop.xlane.xlu0 %928
            %v930 = vmul.f32 %v926, 0.00390625
            %v931 = vmul.f32 %v929, 0.00390625
            %v932 = vmul.f32 %v918, %v918
            %v933 = vmul.f32 %v919, %v919
            %v934 = vsub.f32 %v930, %v932
            %v935 = vsub.f32 %v931, %v933
            %v936 = vld [vmem:[%s6] sm:$0xff]
            %v937 = vld [vmem:[%s6 + $0x8] sm:$0xff]
            %v938 = vadd.f32 %v934, 1e-05
            %v939 = vadd.f32 %v935, 1e-05
            %v940 = vrsqrt.pop %v938
            %v941 = vrsqrt.pop %v939
            %v942 = vmul.f32 %v936, %v940
            %v943 = vmul.f32 %v937, %v941
            %v944 = vld [vmem:[%s7] sm:$0xff]
            %v945 = vld [vmem:[%s7 + $0x8] sm:$0xff]
            %v946 = vmul.f32 %v918, %v942
            %v947 = vmul.f32 %v919, %v943
            %v948 = vsub.f32 %v944, %v946
            %v949 = vsub.f32 %v945, %v947
            %951 = vset.pattern.permute.xlu0 0
            %952 = vperm.xlu0 %951, %v942
            %v953 = vpop.permute.xlu0 %952
            %956 = vset.pattern.permute.xlu0 0
            %957 = vperm.xlu0 %956, %v943
            %v958 = vpop.permute.xlu0 %957
            %v960 = vmul.f32 %v908, %v953
            %v961 = vmul.f32 %v909, %v953
            %v962 = vmul.f32 %v910, %v958
            %v963 = vmul.f32 %v911, %v958
            %965 = vset.pattern.permute.xlu0 0
            %966 = vperm.xlu0 %965, %v948
            %v967 = vpop.permute.xlu0 %966
            %970 = vset.pattern.permute.xlu0 0
            %971 = vperm.xlu0 %970, %v949
            %v972 = vpop.permute.xlu0 %971
            %v974 = vadd.f32 %v960, %v967
            %v975 = vadd.f32 %v961, %v967
            %v976 = vadd.f32 %v962, %v972
            %v977 = vadd.f32 %v963, %v972
            %v978 = vmax.f32 %v974, 0.0
            %v979 = vmax.f32 %v975, 0.0
            %v980 = vmax.f32 %v976, 0.0
            %v981 = vmax.f32 %v977, 0.0
            %v982 = vld [vmem:[%s8] sm:$0xff]
            %v983 = vld [vmem:[%s8 + $0x8] sm:$0xff]
            %vm984 = vcmask 130048
            %v986 = vsel %vm984, %v982, 0
            %v989 = vsel %vm984, %v983, 0
            %991 = vmatprep.subr.mxu0 0.0
            %992 = vmatpush1.msra.mxu0 0.0
            %993 = vmatprep.subr.mxu0 0.0
            %994 = vmatpush1.msra.mxu0 0.0
            %995 = vmatprep.subr.mxu0 0.0
            %996 = vmatpush1.msra.mxu0 0.0
            %997 = vmatprep.subr.mxu0 0.0
            %998 = vmatpush1.msra.mxu0 0.0
            %999 = vmatprep.subr.mxu0 0.0
            %1000 = vmatpush1.msra.mxu0 0.0
            %1001 = vmatprep.subr.mxu0 0.0
            %1002 = vmatpush1.msra.mxu0 0.0
            %1003 = vmatprep.subr.mxu0 0.0
            %1004 = vmatpush1.msra.mxu0 0.0
            %1005 = vmatprep.subr.mxu0 0.0
            %1006 = vmatpush1.msra.mxu0 0.0
            %1007 = vmatprep.subr.mxu0 0.0
            %1008 = vmatpush1.msra.mxu0 0.0
            %1009 = vmatprep.subr.mxu0 0.0
            %1010 = vmatpush1.msra.mxu0 0.0
            %1011 = vmatprep.subr.mxu0 0.0
            %1012 = vmatpush1.msra.mxu0 0.0
            %1013 = vmatprep.subr.mxu0 0.0
            %1014 = vmatpush1.msra.mxu0 0.0
            %1015 = vmatprep.subr.mxu0 0.0
            %1016 = vmatpush1.msra.mxu0 0.0
            %1017 = vmatprep.subr.mxu0 0.0
            %1018 = vmatpush1.msra.mxu0 0.0
            %1019 = vmatprep.subr.mxu0 %v981
            %1020 = vmatpush1.msra.mxu0 %v980
            %1021 = vmatprep.subr.mxu0 %v979
            %1022 = vmatpush1.msra.mxu0 %v978
            %1023 = vmatprep.subr.mxu0 0.0
            %1024 = vmatpush2.msra.mxu0 0.0
            %1025 = vmatprep.subr.mxu0 0.0
            %1026 = vmatpush2.msra.mxu0 0.0
            %1027 = vmatprep.subr.mxu0 0.0
            %1028 = vmatpush2.msra.mxu0 0.0
            %1029 = vmatprep.subr.mxu0 0.0
            %1030 = vmatpush2.msra.mxu0 0.0
            %1031 = vmatprep.subr.mxu0 0.0
            %1032 = vmatpush2.msra.mxu0 0.0
            %1033 = vmatprep.subr.mxu0 0.0
            %1034 = vmatpush2.msra.mxu0 0.0
            %1035 = vmatprep.subr.mxu0 0.0
            %1036 = vmatpush2.msra.mxu0 0.0
            %1037 = vmatprep.subr.mxu0 0.0
            %1038 = vmatpush2.msra.mxu0 0.0
            %1039 = vmatprep.subr.mxu0 0.0
            %1040 = vmatpush2.msra.mxu0 0.0
            %1041 = vmatprep.subr.mxu0 0.0
            %1042 = vmatpush2.msra.mxu0 0.0
            %1043 = vmatprep.subr.mxu0 0.0
            %1044 = vmatpush2.msra.mxu0 0.0
            %1045 = vmatprep.subr.mxu0 0.0
            %1046 = vmatpush2.msra.mxu0 0.0
            %1047 = vmatprep.subr.mxu0 0.0
            %1048 = vmatpush2.msra.mxu0 0.0
            %1049 = vmatprep.subr.mxu0 0.0
            %1050 = vmatpush2.msra.mxu0 0.0
            %1051 = vmatprep.subr.mxu0 0.0
            %1052 = vmatpush2.msra.mxu0 0.0
            %1053 = vmatprep.subr.mxu0 0.0
            %1054 = vmatpush2.msra.mxu0 0.0
            %1055 = vmatprep.mubr.f32.mxu0 0.0
            %1056 = vmatmul.mubr.f32.gmra.mxu0 %v986
            %v1057 = vpop.f32.mrf.mxu0
            %v1058 = vadd.f32 0.0, %v1057
            %v1059 = vpop.f32.mrf.mxu0
            %v1060 = vadd.f32 0.0, %v1059
            %1061 = vmatprep.mubr.f32.mxu0 0.0
            %1062 = vmatmul.mubr.f32.gmra.mxu0 %v989
            %v1063 = vpop.f32.mrf.mxu0
            %v1064 = vadd.f32 0.0, %v1063
            %v1065 = vpop.f32.mrf.mxu0
            %v1066 = vadd.f32 0.0, %v1065
            %1067 = vdwg.mxu0
            %v1068 = vpack.c.bf16 %v1064, %v1058
            %v1069 = vpack.c.bf16 %v1066, %v1060
            %v1072 = vunpack.c.l.b16 %v1068
            %v1073 = vunpack.c.l.b16 %v1069
            %v1074 = vunpack.c.h.b16 %v1068
            %v1075 = vunpack.c.h.b16 %v1069
            %v1076 = vpack.c.b16 %v1073, %v1072
            %v1077 = vpack.c.b16 %v1075, %v1074
            %1080 = vst [vmem:[#allocation2] sm:$0xff] %v1076
            %1081 = vst [vmem:[#allocation2 + $0x8] sm:$0xff] %v1077
          $region84: #{tpu_custom_call.1} parent=75 // pred_fallthru
            _
          %p1082 = scmp.eq.s32.totalorder %s29, 2
          // Predicated region
          $region85: #{tpu_custom_call.1} parent=75 // pred_check
            %p1083 = pneg %p1082
          $region86: #{tpu_custom_call.1} parent=75 // pred_check_branch
            %1085 = sbr.rel (%p1083) target = $region88
          $region87: #{tpu_custom_call.1} parent=75 // pred_region
            %v1086 = vld [vmem:[#allocation3] ss:$8 sm:$0x3]
            %v1087 = vld [vmem:[#allocation4] sm:$0x1]
            %1089 = vset.pattern.permute.xlu0 0
            %1090 = vperm.xlu0 %1089, %v1087
            %v1091 = vpop.permute.xlu0 %1090
            %v1093 = vlaneseq
            %v1094 = vshrl.u32 %v1093, 7
            %v1095 = vsub.s32 0, %v1094
            %v1096 = vrot.slane %v1091, %v1095
            %v1097 = vadd.f32 %v1086, %v1096
            %v1098 = vsub.f32 0.0, %v1097
            %v1099 = vmul.f32 %v1098, 1.442695
            %v1100 = vpow.pop %v1099
            %v1101 = vadd.f32 %v1100, 1.0
            %v1102 = vrcp.pop %v1101
            %v1103 = vlaneseq
            %vm1104 = vcmp.ge.s32.totalorder %v1103, 0
            %vm1105 = vcmp.lt.s32.totalorder %v1103, 256
            %vm1106 = vmand %vm1104, %vm1105
            %1107 = vst.msk [vmem:[#allocation8] sm:$0x3] %vm1106, %v1102
          $region88: #{tpu_custom_call.1} parent=75 // pred_fallthru
            _
        $region76: #{tpu_custom_call.1} parent=59 // pred_fallthru
          _
        // Predicated region
        $region89: #{tpu_custom_call.1} parent=59 // pred_check
          %p1108 = pneg %p265
        $region90: #{tpu_custom_call.1} parent=59 // pred_check_branch
          %1110 = sbr.rel (%p1108) target = $region92
        $region91: #{tpu_custom_call.1} parent=59 // pred_region
          %s1112 = ssub.s32 32, 32
          %1113 = vsyncadd [#allocation7], %s1112
          %s1115 = sshll.u32 [#allocation8], 4
          %s1116 = int_to_ptr.vmem [resolvable:$true] %s1115
          %1118 = dma.vmem_to_hbm [thread:$0]  %s1116, 32, %s10, [#allocation7]
        $region92: #{tpu_custom_call.1} parent=59 // pred_fallthru
          _
        // Predicated region
        $region93: #{tpu_custom_call.1} parent=59 // pred_check
          %p1119 = pneg %p265
        $region94: #{tpu_custom_call.1} parent=59 // pred_check_branch
          %1121 = sbr.rel (%p1119) target = $region96
        $region95: #{tpu_custom_call.1} parent=59 // pred_region
          %1122 = dma.done [#allocation7], 32
        $region96: #{tpu_custom_call.1} parent=59 // pred_fallthru
          _
      $region60: #{tpu_custom_call.1} parent=5 // pred_fallthru
        _
      %p1123 = scmp.le.s32.totalorder 2, %s20
      // Predicated region
      $region97: #{tpu_custom_call.1} parent=5 // pred_check
        %p1124 = pneg %p1123
      $region98: #{tpu_custom_call.1} parent=5 // pred_check_branch
        %1126 = sbr.rel (%p1124) target = $region100
      $region99: #{tpu_custom_call.1} parent=5 // pred_region
        %s1127 = ssub.s32 %s20, 2
      $region100: #{tpu_custom_call.1} parent=5 // pred_fallthru
        _
    $region6: #{tpu_custom_call.1} parent=1 // loop_footer
      %s24 = sadd.s32 1, %s20
    $region7: #{tpu_custom_call.1} parent=1 // loop_footer_branch
      %19 = sbr.rel target = $region3
    $region8: #{tpu_custom_call.1} parent=1 // loop_exit
      _
    %1128 = vsyncpa [#allocation6], 1
    %s1129 = scalar_lea.sflag [#allocation6], 1
    %1130 = vsyncpa %s1129, 1
    %1131 = vsyncpa [#allocation7], 1
    %s1132 = scalar_lea.sflag [#allocation7], 1
    %1133 = vsyncpa %s1132, 1

</llo_original>
